<compile_context>
chip_gen: v6e
topology: v6e:2x2x1
jax: 0.10.0
libtpu: 0.0.40
codegen_flags: <defaults>
</compile_context>

<pallas_src>
import functools

import jax
import jax.numpy as jnp
from jax.experimental import pallas as pl
from jax.experimental.pallas import tpu as pltpu


def _gin_backbone_kernel(x_ref, a_ref, w1_ref, b1_ref, w2_ref, b2_ref, o_ref,
                         slab_ref, *, order, support_len, bt, n, in_dim):
    cdt = w1_ref.dtype                                   # bf16 MXU feed dtype

    # ---- Graph propagation -> VMEM slab ------------------------------------
    # slab[b*N:(b+1)*N, idx*in_dim:(idx+1)*in_dim] = A_s^(k+1) @ x_b, with the
    # same feature ordering as torch.cat(res, dim=-1).
    for b in range(bt):
        x_b = x_ref[b]                                   # (N, in_dim) bf16
        idx = 0
        for s in range(support_len):
            a = a_ref[s]                                 # (N, N) bf16
            state = x_b
            for _ in range(order):
                state = jnp.dot(a, state,
                                preferred_element_type=jnp.float32)  # f32
                slab_ref[pl.ds(b * n, n),
                         pl.ds(idx * in_dim, in_dim)] = state
                state = state.astype(cdt)                # bf16 feed for next hop
                idx += 1

    # ---- linear1 (+ folded eval-mode BN) -> relu -> linear2 -----------------
    slab = slab_ref[...].astype(cdt)                     # (Bt*N, k_total)
    h = jnp.dot(slab, w1_ref[...],
                preferred_element_type=jnp.float32) + b1_ref[...]
    h = jnp.maximum(h, 0.0)                              # relu (dropout = id)
    o = jnp.dot(h.astype(cdt), w2_ref[...],
                preferred_element_type=jnp.float32) + b2_ref[...]
    o_ref[...] = o.reshape(bt, n, -1).astype(o_ref.dtype)


def gin_backbone_forward(x, support, params, *, order, batch_tile=None):
    """x: (B, N, in_dim), support: (support_len, N, N) shared across batch."""
    B, N, in_dim = x.shape
    support_len = support.shape[0]
    k_total = order * support_len * in_dim
    hidden = params["w1"].shape[1]
    out_dim = params["w2"].shape[1]
    assert params["w1"].shape[0] == k_total

    if batch_tile is None:
        # Default: 2 parallel grid steps (v7x megacore) when possible,
        # otherwise fold the whole batch into one step (v5e/v6e single TC).
        batch_tile = B // 2 if (B >= 2 and B % 2 == 0) else B
    assert B % batch_tile == 0
    grid_b = B // batch_tile

    # Fold eval-mode BatchNorm1d into linear1 (wrapper-side, zero kernel cost).
    scale = params["bn_gamma"] / jnp.sqrt(params["bn_var"] + params["bn_eps"])
    w1_folded = params["w1"] * scale[None, :]
    b1_folded = (params["b1"] - params["bn_mean"]) * scale + params["bn_beta"]

    cdt = jnp.bfloat16  # MXU-native operand dtype; accumulation stays f32.
    kernel = functools.partial(_gin_backbone_kernel, order=order,
                               support_len=support_len, bt=batch_tile,
                               n=N, in_dim=in_dim)

    flops = 2 * B * (order * support_len * N * N * in_dim
                     + N * k_total * hidden + N * hidden * out_dim)
    bytes_accessed = (B * N * in_dim * 2 + support_len * N * N * 2
                      + k_total * hidden * 2 + hidden * 4
                      + hidden * out_dim * 2 + out_dim * 4
                      + B * N * out_dim * 4)

    out = pl.pallas_call(
        kernel,
        out_shape=jax.ShapeDtypeStruct((B, N, out_dim), jnp.float32),
        grid_spec=pltpu.PrefetchScalarGridSpec(
            num_scalar_prefetch=0,
            grid=(grid_b,),
            in_specs=[
                pl.BlockSpec((batch_tile, N, in_dim), lambda i: (i, 0, 0)),
                pl.BlockSpec((support_len, N, N), lambda i: (0, 0, 0)),
                pl.BlockSpec((k_total, hidden), lambda i: (0, 0)),
                pl.BlockSpec((1, hidden), lambda i: (0, 0)),
                pl.BlockSpec((hidden, out_dim), lambda i: (0, 0)),
                pl.BlockSpec((1, out_dim), lambda i: (0, 0)),
            ],
            out_specs=pl.BlockSpec((batch_tile, N, out_dim),
                                   lambda i: (i, 0, 0)),
            scratch_shapes=[pltpu.VMEM((batch_tile * N, k_total), jnp.float32)],
        ),
        compiler_params=pltpu.CompilerParams(
            dimension_semantics=("parallel",)),
        cost_estimate=pl.CostEstimate(flops=flops, transcendentals=0,
                                      bytes_accessed=bytes_accessed),
    )(x.astype(cdt),
      support.astype(cdt),
      w1_folded.astype(cdt),
      b1_folded.reshape(1, hidden).astype(jnp.float32),
      params["w2"].astype(cdt),
      params["b2"].reshape(1, out_dim).astype(jnp.float32))
    return out


def gin_backbone_ref(x, support, params, *, order):
    """Pure-JAX f32 reference mirroring the PyTorch forward (eval mode)."""
    res = []
    for s in range(support.shape[0]):
        A = support[s]
        out = x
        for _ in range(order):
            out = jnp.einsum("nk,bkd->bnd", A, out)   # torch.matmul(A, out)
            res.append(out)
    h = jnp.concatenate(res, axis=-1) @ params["w1"] + params["b1"]
    scale = params["bn_gamma"] / jnp.sqrt(params["bn_var"] + params["bn_eps"])
    h = (h - params["bn_mean"]) * scale + params["bn_beta"]       # BN (eval)
    h = jnp.maximum(h, 0.0)                                       # dropout=id, relu
    out = h @ params["w2"] + params["b2"]                         # dropout=id
    return out


def init_params(key, *, in_dim, hidden_dim, out_dim, order, support_len):
    """Synthetic init mirroring nn.Linear defaults; BN stats random so the
    eval-mode BatchNorm fold is actually exercised."""
    k_total = order * support_len * in_dim
    ks = jax.random.split(key, 8)

    def linear_init(kw, kb, fan_in, fan_out):
        s = 1.0 / (fan_in ** 0.5)
        w = jax.random.uniform(kw, (fan_in, fan_out), jnp.float32, -s, s)
        b = jax.random.uniform(kb, (fan_out,), jnp.float32, -s, s)
        return w, b

    w1, b1 = linear_init(ks[0], ks[1], k_total, hidden_dim)
    w2, b2 = linear_init(ks[2], ks[3], hidden_dim, out_dim)
    gamma = jax.random.uniform(ks[4], (hidden_dim,), jnp.float32, 0.5, 1.5)
    beta = jax.random.uniform(ks[5], (hidden_dim,), jnp.float32, -0.5, 0.5)
    mean = jax.random.uniform(ks[6], (hidden_dim,), jnp.float32, -0.5, 0.5)
    var = jax.random.uniform(ks[7], (hidden_dim,), jnp.float32, 0.5, 1.5)
    return {"w1": w1, "b1": b1, "w2": w2, "b2": b2,
            "bn_gamma": gamma, "bn_beta": beta,
            "bn_mean": mean, "bn_var": var,
            "bn_eps": jnp.float32(1e-5)}


if __name__ == "__main__":
    # Small shapes consistent with the module's forward:
    #   x: (B, N, in_dim), support: list of (N, N) adjacencies (stacked).
    B, N, in_dim = 8, 16, 16
    order, support_len = 2, 2
    hidden_dim, out_dim = 128, 128          # lane-dense feature dims

    key = jax.random.PRNGKey(0)
    kx, ka, kp = jax.random.split(key, 3)
    x = jax.random.normal(kx, (B, N, in_dim), jnp.float32)
    # Row-normalized non-negative supports (normalized adjacency-like).
    a_raw = jax.random.uniform(ka, (support_len, N, N), jnp.float32, 0.0, 1.0)
    support = a_raw / jnp.sum(a_raw, axis=-1, keepdims=True)

    params = init_params(kp, in_dim=in_dim, hidden_dim=hidden_dim,
                         out_dim=out_dim, order=order, support_len=support_len)

    out = gin_backbone_forward(x, support, params, order=order)
    jax.block_until_ready(out)

    ref = gin_backbone_ref(x, support, params, order=order)
    assert out.shape == (B, N, out_dim)
    max_diff = float(jnp.max(jnp.abs(out - ref)))
    # bf16 matmul operands (f32 accumulation) vs pure-f32 reference.
    assert jnp.allclose(out, ref, rtol=3e-2, atol=3e-2), max_diff

    print("KERNEL_OK")
</pallas_src>

<mosaic_0001>
module attributes {stable_mosaic.version = 11 : i64} {
  func.func @_gin_backbone_kernel(%arg0: i32, %arg1: memref<4x16x16xbf16, #tpu.memory_space<vmem>>, %arg2: memref<2x16x16xbf16, #tpu.memory_space<vmem>>, %arg3: memref<64x128xbf16, #tpu.memory_space<vmem>>, %arg4: memref<1x128xf32, #tpu.memory_space<vmem>>, %arg5: memref<128x128xbf16, #tpu.memory_space<vmem>>, %arg6: memref<1x128xf32, #tpu.memory_space<vmem>>, %arg7: memref<4x16x128xf32, #tpu.memory_space<vmem>>, %arg8: memref<64x64xf32, #tpu.memory_space<vmem>>) attributes {dimension_semantics = [#tpu.dimension_semantics<parallel>], iteration_bounds = array<i64: 2>, scalar_prefetch = 0 : i64, scratch_operands = 1 : i64, tpu.core_type = #tpu.core_type<tc>, window_params = [{transform_indices = @transform_0, window_bounds = array<i64: 4, 16, 16>}, {pipeline_mode = #tpu.pipeline_mode<synchronous>, transform_indices = @transform_1, window_bounds = array<i64: 2, 16, 16>}, {pipeline_mode = #tpu.pipeline_mode<synchronous>, transform_indices = @transform_2, window_bounds = array<i64: 64, 128>}, {pipeline_mode = #tpu.pipeline_mode<synchronous>, transform_indices = @transform_3, window_bounds = array<i64: 1, 128>}, {pipeline_mode = #tpu.pipeline_mode<synchronous>, transform_indices = @transform_4, window_bounds = array<i64: 128, 128>}, {pipeline_mode = #tpu.pipeline_mode<synchronous>, transform_indices = @transform_5, window_bounds = array<i64: 1, 128>}, {transform_indices = @transform_6, window_bounds = array<i64: 4, 16, 128>}]} {
    %c0 = arith.constant 0 : index
    %c0_0 = arith.constant 0 : index
    %c0_1 = arith.constant 0 : index
    %0 = vector.load %arg1[%c0, %c0_0, %c0_1] : memref<4x16x16xbf16, #tpu.memory_space<vmem>>, vector<1x16x16xbf16>
    %1 = vector.shape_cast %0 : vector<1x16x16xbf16> to vector<16x16xbf16>
    %c0_2 = arith.constant 0 : index
    %c0_3 = arith.constant 0 : index
    %c0_4 = arith.constant 0 : index
    %2 = vector.load %arg2[%c0_2, %c0_3, %c0_4] : memref<2x16x16xbf16, #tpu.memory_space<vmem>>, vector<1x16x16xbf16>
    %3 = vector.shape_cast %2 : vector<1x16x16xbf16> to vector<16x16xbf16>
    %cst = arith.constant dense<0.000000e+00> : vector<16x16xf32>
    %4 = tpu.matmul %3, %1, %cst {dimension_numbers = #tpu.dot_dimension_numbers<[1], [0], [0], [1], [0, 0, 1, 1], [], []>} : vector<16x16xbf16>, vector<16x16xbf16>, vector<16x16xf32> -> vector<16x16xf32>
    %c0_5 = arith.constant 0 : index
    %c0_6 = arith.constant 0 : index
    %5 = vector.load %arg8[%c0_5, %c0_6] : memref<64x64xf32, #tpu.memory_space<vmem>>, vector<16x16xf32>
    tpu.vector_store %arg8[%c0_5, %c0_6], %4 {strides = array<i32>} : memref<64x64xf32, #tpu.memory_space<vmem>>, vector<16x16xf32>,
    %6 = arith.truncf %4 : vector<16x16xf32> to vector<16x16xbf16>
    %cst_7 = arith.constant dense<0.000000e+00> : vector<16x16xf32>
    %7 = tpu.matmul %3, %6, %cst_7 {dimension_numbers = #tpu.dot_dimension_numbers<[1], [0], [0], [1], [0, 0, 1, 1], [], []>} : vector<16x16xbf16>, vector<16x16xbf16>, vector<16x16xf32> -> vector<16x16xf32>
    %c0_8 = arith.constant 0 : index
    %c16 = arith.constant 16 : index
    %8 = vector.load %arg8[%c0_8, %c16] : memref<64x64xf32, #tpu.memory_space<vmem>>, vector<16x16xf32>
    tpu.vector_store %arg8[%c0_8, %c16], %7 {strides = array<i32>} : memref<64x64xf32, #tpu.memory_space<vmem>>, vector<16x16xf32>,
    %c1 = arith.constant 1 : index
    %c0_9 = arith.constant 0 : index
    %c0_10 = arith.constant 0 : index
    %9 = vector.load %arg2[%c1, %c0_9, %c0_10] : memref<2x16x16xbf16, #tpu.memory_space<vmem>>, vector<1x16x16xbf16>
    %10 = vector.shape_cast %9 : vector<1x16x16xbf16> to vector<16x16xbf16>
    %cst_11 = arith.constant dense<0.000000e+00> : vector<16x16xf32>
    %11 = tpu.matmul %10, %1, %cst_11 {dimension_numbers = #tpu.dot_dimension_numbers<[1], [0], [0], [1], [0, 0, 1, 1], [], []>} : vector<16x16xbf16>, vector<16x16xbf16>, vector<16x16xf32> -> vector<16x16xf32>
    %c0_12 = arith.constant 0 : index
    %c32 = arith.constant 32 : index
    %12 = vector.load %arg8[%c0_12, %c32] : memref<64x64xf32, #tpu.memory_space<vmem>>, vector<16x16xf32>
    tpu.vector_store %arg8[%c0_12, %c32], %11 {strides = array<i32>} : memref<64x64xf32, #tpu.memory_space<vmem>>, vector<16x16xf32>,
    %13 = arith.truncf %11 : vector<16x16xf32> to vector<16x16xbf16>
    %cst_13 = arith.constant dense<0.000000e+00> : vector<16x16xf32>
    %14 = tpu.matmul %10, %13, %cst_13 {dimension_numbers = #tpu.dot_dimension_numbers<[1], [0], [0], [1], [0, 0, 1, 1], [], []>} : vector<16x16xbf16>, vector<16x16xbf16>, vector<16x16xf32> -> vector<16x16xf32>
    %c0_14 = arith.constant 0 : index
    %c48 = arith.constant 48 : index
    %15 = vector.load %arg8[%c0_14, %c48] : memref<64x64xf32, #tpu.memory_space<vmem>>, vector<16x16xf32>
    tpu.vector_store %arg8[%c0_14, %c48], %14 {strides = array<i32>} : memref<64x64xf32, #tpu.memory_space<vmem>>, vector<16x16xf32>,
    %c1_15 = arith.constant 1 : index
    %c0_16 = arith.constant 0 : index
    %c0_17 = arith.constant 0 : index
    %16 = vector.load %arg1[%c1_15, %c0_16, %c0_17] : memref<4x16x16xbf16, #tpu.memory_space<vmem>>, vector<1x16x16xbf16>
    %17 = vector.shape_cast %16 : vector<1x16x16xbf16> to vector<16x16xbf16>
    %c0_18 = arith.constant 0 : index
    %c0_19 = arith.constant 0 : index
    %c0_20 = arith.constant 0 : index
    %18 = vector.load %arg2[%c0_18, %c0_19, %c0_20] : memref<2x16x16xbf16, #tpu.memory_space<vmem>>, vector<1x16x16xbf16>
    %19 = vector.shape_cast %18 : vector<1x16x16xbf16> to vector<16x16xbf16>
    %cst_21 = arith.constant dense<0.000000e+00> : vector<16x16xf32>
    %20 = tpu.matmul %19, %17, %cst_21 {dimension_numbers = #tpu.dot_dimension_numbers<[1], [0], [0], [1], [0, 0, 1, 1], [], []>} : vector<16x16xbf16>, vector<16x16xbf16>, vector<16x16xf32> -> vector<16x16xf32>
    %c16_22 = arith.constant 16 : index
    %c0_23 = arith.constant 0 : index
    %21 = vector.load %arg8[%c16_22, %c0_23] : memref<64x64xf32, #tpu.memory_space<vmem>>, vector<16x16xf32>
    tpu.vector_store %arg8[%c16_22, %c0_23], %20 {strides = array<i32>} : memref<64x64xf32, #tpu.memory_space<vmem>>, vector<16x16xf32>,
    %22 = arith.truncf %20 : vector<16x16xf32> to vector<16x16xbf16>
    %cst_24 = arith.constant dense<0.000000e+00> : vector<16x16xf32>
    %23 = tpu.matmul %19, %22, %cst_24 {dimension_numbers = #tpu.dot_dimension_numbers<[1], [0], [0], [1], [0, 0, 1, 1], [], []>} : vector<16x16xbf16>, vector<16x16xbf16>, vector<16x16xf32> -> vector<16x16xf32>
    %c16_25 = arith.constant 16 : index
    %c16_26 = arith.constant 16 : index
    %24 = vector.load %arg8[%c16_25, %c16_26] : memref<64x64xf32, #tpu.memory_space<vmem>>, vector<16x16xf32>
    tpu.vector_store %arg8[%c16_25, %c16_26], %23 {strides = array<i32>} : memref<64x64xf32, #tpu.memory_space<vmem>>, vector<16x16xf32>,
    %c1_27 = arith.constant 1 : index
    %c0_28 = arith.constant 0 : index
    %c0_29 = arith.constant 0 : index
    %25 = vector.load %arg2[%c1_27, %c0_28, %c0_29] : memref<2x16x16xbf16, #tpu.memory_space<vmem>>, vector<1x16x16xbf16>
    %26 = vector.shape_cast %25 : vector<1x16x16xbf16> to vector<16x16xbf16>
    %cst_30 = arith.constant dense<0.000000e+00> : vector<16x16xf32>
    %27 = tpu.matmul %26, %17, %cst_30 {dimension_numbers = #tpu.dot_dimension_numbers<[1], [0], [0], [1], [0, 0, 1, 1], [], []>} : vector<16x16xbf16>, vector<16x16xbf16>, vector<16x16xf32> -> vector<16x16xf32>
    %c16_31 = arith.constant 16 : index
    %c32_32 = arith.constant 32 : index
    %28 = vector.load %arg8[%c16_31, %c32_32] : memref<64x64xf32, #tpu.memory_space<vmem>>, vector<16x16xf32>
    tpu.vector_store %arg8[%c16_31, %c32_32], %27 {strides = array<i32>} : memref<64x64xf32, #tpu.memory_space<vmem>>, vector<16x16xf32>,
    %29 = arith.truncf %27 : vector<16x16xf32> to vector<16x16xbf16>
    %cst_33 = arith.constant dense<0.000000e+00> : vector<16x16xf32>
    %30 = tpu.matmul %26, %29, %cst_33 {dimension_numbers = #tpu.dot_dimension_numbers<[1], [0], [0], [1], [0, 0, 1, 1], [], []>} : vector<16x16xbf16>, vector<16x16xbf16>, vector<16x16xf32> -> vector<16x16xf32>
    %c16_34 = arith.constant 16 : index
    %c48_35 = arith.constant 48 : index
    %31 = vector.load %arg8[%c16_34, %c48_35] : memref<64x64xf32, #tpu.memory_space<vmem>>, vector<16x16xf32>
    tpu.vector_store %arg8[%c16_34, %c48_35], %30 {strides = array<i32>} : memref<64x64xf32, #tpu.memory_space<vmem>>, vector<16x16xf32>,
    %c2 = arith.constant 2 : index
    %c0_36 = arith.constant 0 : index
    %c0_37 = arith.constant 0 : index
    %32 = vector.load %arg1[%c2, %c0_36, %c0_37] : memref<4x16x16xbf16, #tpu.memory_space<vmem>>, vector<1x16x16xbf16>
    %33 = vector.shape_cast %32 : vector<1x16x16xbf16> to vector<16x16xbf16>
    %c0_38 = arith.constant 0 : index
    %c0_39 = arith.constant 0 : index
    %c0_40 = arith.constant 0 : index
    %34 = vector.load %arg2[%c0_38, %c0_39, %c0_40] : memref<2x16x16xbf16, #tpu.memory_space<vmem>>, vector<1x16x16xbf16>
    %35 = vector.shape_cast %34 : vector<1x16x16xbf16> to vector<16x16xbf16>
    %cst_41 = arith.constant dense<0.000000e+00> : vector<16x16xf32>
    %36 = tpu.matmul %35, %33, %cst_41 {dimension_numbers = #tpu.dot_dimension_numbers<[1], [0], [0], [1], [0, 0, 1, 1], [], []>} : vector<16x16xbf16>, vector<16x16xbf16>, vector<16x16xf32> -> vector<16x16xf32>
    %c32_42 = arith.constant 32 : index
    %c0_43 = arith.constant 0 : index
    %37 = vector.load %arg8[%c32_42, %c0_43] : memref<64x64xf32, #tpu.memory_space<vmem>>, vector<16x16xf32>
    tpu.vector_store %arg8[%c32_42, %c0_43], %36 {strides = array<i32>} : memref<64x64xf32, #tpu.memory_space<vmem>>, vector<16x16xf32>,
    %38 = arith.truncf %36 : vector<16x16xf32> to vector<16x16xbf16>
    %cst_44 = arith.constant dense<0.000000e+00> : vector<16x16xf32>
    %39 = tpu.matmul %35, %38, %cst_44 {dimension_numbers = #tpu.dot_dimension_numbers<[1], [0], [0], [1], [0, 0, 1, 1], [], []>} : vector<16x16xbf16>, vector<16x16xbf16>, vector<16x16xf32> -> vector<16x16xf32>
    %c32_45 = arith.constant 32 : index
    %c16_46 = arith.constant 16 : index
    %40 = vector.load %arg8[%c32_45, %c16_46] : memref<64x64xf32, #tpu.memory_space<vmem>>, vector<16x16xf32>
    tpu.vector_store %arg8[%c32_45, %c16_46], %39 {strides = array<i32>} : memref<64x64xf32, #tpu.memory_space<vmem>>, vector<16x16xf32>,
    %c1_47 = arith.constant 1 : index
    %c0_48 = arith.constant 0 : index
    %c0_49 = arith.constant 0 : index
    %41 = vector.load %arg2[%c1_47, %c0_48, %c0_49] : memref<2x16x16xbf16, #tpu.memory_space<vmem>>, vector<1x16x16xbf16>
    %42 = vector.shape_cast %41 : vector<1x16x16xbf16> to vector<16x16xbf16>
    %cst_50 = arith.constant dense<0.000000e+00> : vector<16x16xf32>
    %43 = tpu.matmul %42, %33, %cst_50 {dimension_numbers = #tpu.dot_dimension_numbers<[1], [0], [0], [1], [0, 0, 1, 1], [], []>} : vector<16x16xbf16>, vector<16x16xbf16>, vector<16x16xf32> -> vector<16x16xf32>
    %c32_51 = arith.constant 32 : index
    %c32_52 = arith.constant 32 : index
    %44 = vector.load %arg8[%c32_51, %c32_52] : memref<64x64xf32, #tpu.memory_space<vmem>>, vector<16x16xf32>
    tpu.vector_store %arg8[%c32_51, %c32_52], %43 {strides = array<i32>} : memref<64x64xf32, #tpu.memory_space<vmem>>, vector<16x16xf32>,
    %45 = arith.truncf %43 : vector<16x16xf32> to vector<16x16xbf16>
    %cst_53 = arith.constant dense<0.000000e+00> : vector<16x16xf32>
    %46 = tpu.matmul %42, %45, %cst_53 {dimension_numbers = #tpu.dot_dimension_numbers<[1], [0], [0], [1], [0, 0, 1, 1], [], []>} : vector<16x16xbf16>, vector<16x16xbf16>, vector<16x16xf32> -> vector<16x16xf32>
    %c32_54 = arith.constant 32 : index
    %c48_55 = arith.constant 48 : index
    %47 = vector.load %arg8[%c32_54, %c48_55] : memref<64x64xf32, #tpu.memory_space<vmem>>, vector<16x16xf32>
    tpu.vector_store %arg8[%c32_54, %c48_55], %46 {strides = array<i32>} : memref<64x64xf32, #tpu.memory_space<vmem>>, vector<16x16xf32>,
    %c3 = arith.constant 3 : index
    %c0_56 = arith.constant 0 : index
    %c0_57 = arith.constant 0 : index
    %48 = vector.load %arg1[%c3, %c0_56, %c0_57] : memref<4x16x16xbf16, #tpu.memory_space<vmem>>, vector<1x16x16xbf16>
    %49 = vector.shape_cast %48 : vector<1x16x16xbf16> to vector<16x16xbf16>
    %c0_58 = arith.constant 0 : index
    %c0_59 = arith.constant 0 : index
    %c0_60 = arith.constant 0 : index
    %50 = vector.load %arg2[%c0_58, %c0_59, %c0_60] : memref<2x16x16xbf16, #tpu.memory_space<vmem>>, vector<1x16x16xbf16>
    %51 = vector.shape_cast %50 : vector<1x16x16xbf16> to vector<16x16xbf16>
    %cst_61 = arith.constant dense<0.000000e+00> : vector<16x16xf32>
    %52 = tpu.matmul %51, %49, %cst_61 {dimension_numbers = #tpu.dot_dimension_numbers<[1], [0], [0], [1], [0, 0, 1, 1], [], []>} : vector<16x16xbf16>, vector<16x16xbf16>, vector<16x16xf32> -> vector<16x16xf32>
    %c48_62 = arith.constant 48 : index
    %c0_63 = arith.constant 0 : index
    %53 = vector.load %arg8[%c48_62, %c0_63] : memref<64x64xf32, #tpu.memory_space<vmem>>, vector<16x16xf32>
    tpu.vector_store %arg8[%c48_62, %c0_63], %52 {strides = array<i32>} : memref<64x64xf32, #tpu.memory_space<vmem>>, vector<16x16xf32>,
    %54 = arith.truncf %52 : vector<16x16xf32> to vector<16x16xbf16>
    %cst_64 = arith.constant dense<0.000000e+00> : vector<16x16xf32>
    %55 = tpu.matmul %51, %54, %cst_64 {dimension_numbers = #tpu.dot_dimension_numbers<[1], [0], [0], [1], [0, 0, 1, 1], [], []>} : vector<16x16xbf16>, vector<16x16xbf16>, vector<16x16xf32> -> vector<16x16xf32>
    %c48_65 = arith.constant 48 : index
    %c16_66 = arith.constant 16 : index
    %56 = vector.load %arg8[%c48_65, %c16_66] : memref<64x64xf32, #tpu.memory_space<vmem>>, vector<16x16xf32>
    tpu.vector_store %arg8[%c48_65, %c16_66], %55 {strides = array<i32>} : memref<64x64xf32, #tpu.memory_space<vmem>>, vector<16x16xf32>,
    %c1_67 = arith.constant 1 : index
    %c0_68 = arith.constant 0 : index
    %c0_69 = arith.constant 0 : index
    %57 = vector.load %arg2[%c1_67, %c0_68, %c0_69] : memref<2x16x16xbf16, #tpu.memory_space<vmem>>, vector<1x16x16xbf16>
    %58 = vector.shape_cast %57 : vector<1x16x16xbf16> to vector<16x16xbf16>
    %cst_70 = arith.constant dense<0.000000e+00> : vector<16x16xf32>
    %59 = tpu.matmul %58, %49, %cst_70 {dimension_numbers = #tpu.dot_dimension_numbers<[1], [0], [0], [1], [0, 0, 1, 1], [], []>} : vector<16x16xbf16>, vector<16x16xbf16>, vector<16x16xf32> -> vector<16x16xf32>
    %c48_71 = arith.constant 48 : index
    %c32_72 = arith.constant 32 : index
    %60 = vector.load %arg8[%c48_71, %c32_72] : memref<64x64xf32, #tpu.memory_space<vmem>>, vector<16x16xf32>
    tpu.vector_store %arg8[%c48_71, %c32_72], %59 {strides = array<i32>} : memref<64x64xf32, #tpu.memory_space<vmem>>, vector<16x16xf32>,
    %61 = arith.truncf %59 : vector<16x16xf32> to vector<16x16xbf16>
    %cst_73 = arith.constant dense<0.000000e+00> : vector<16x16xf32>
    %62 = tpu.matmul %58, %61, %cst_73 {dimension_numbers = #tpu.dot_dimension_numbers<[1], [0], [0], [1], [0, 0, 1, 1], [], []>} : vector<16x16xbf16>, vector<16x16xbf16>, vector<16x16xf32> -> vector<16x16xf32>
    %c48_74 = arith.constant 48 : index
    %c48_75 = arith.constant 48 : index
    %63 = vector.load %arg8[%c48_74, %c48_75] : memref<64x64xf32, #tpu.memory_space<vmem>>, vector<16x16xf32>
    tpu.vector_store %arg8[%c48_74, %c48_75], %62 {strides = array<i32>} : memref<64x64xf32, #tpu.memory_space<vmem>>, vector<16x16xf32>,
    %c0_76 = arith.constant 0 : index
    %c0_77 = arith.constant 0 : index
    %64 = vector.load %arg8[%c0_76, %c0_77] : memref<64x64xf32, #tpu.memory_space<vmem>>, vector<64x64xf32>
    %65 = arith.truncf %64 : vector<64x64xf32> to vector<64x64xbf16>
    %c0_78 = arith.constant 0 : index
    %c0_79 = arith.constant 0 : index
    %66 = vector.load %arg3[%c0_78, %c0_79] : memref<64x128xbf16, #tpu.memory_space<vmem>>, vector<64x128xbf16>
    %cst_80 = arith.constant dense<0.000000e+00> : vector<64x128xf32>
    %67 = tpu.matmul %65, %66, %cst_80 {dimension_numbers = #tpu.dot_dimension_numbers<[1], [0], [0], [1], [0, 0, 1, 1], [], []>} : vector<64x64xbf16>, vector<64x128xbf16>, vector<64x128xf32> -> vector<64x128xf32>
    %c0_81 = arith.constant 0 : index
    %c0_82 = arith.constant 0 : index
    %68 = vector.load %arg4[%c0_81, %c0_82] : memref<1x128xf32, #tpu.memory_space<vmem>>, vector<1x128xf32>
    %69 = vector.broadcast %68 : vector<1x128xf32> to vector<64x128xf32>
    %70 = arith.addf %67, %69 : vector<64x128xf32>
    %cst_83 = arith.constant 0.000000e+00 : f32
    %71 = vector.broadcast %cst_83 : f32 to vector<64x128xf32>
    %72 = arith.maximumf %70, %71 : vector<64x128xf32>
    %73 = arith.truncf %72 : vector<64x128xf32> to vector<64x128xbf16>
    %c0_84 = arith.constant 0 : index
    %c0_85 = arith.constant 0 : index
    %74 = vector.load %arg5[%c0_84, %c0_85] : memref<128x128xbf16, #tpu.memory_space<vmem>>, vector<128x128xbf16>
    %cst_86 = arith.constant dense<0.000000e+00> : vector<64x128xf32>
    %75 = tpu.matmul %73, %74, %cst_86 {dimension_numbers = #tpu.dot_dimension_numbers<[1], [0], [0], [1], [0, 0, 1, 1], [], []>} : vector<64x128xbf16>, vector<128x128xbf16>, vector<64x128xf32> -> vector<64x128xf32>
    %c0_87 = arith.constant 0 : index
    %c0_88 = arith.constant 0 : index
    %76 = vector.load %arg6[%c0_87, %c0_88] : memref<1x128xf32, #tpu.memory_space<vmem>>, vector<1x128xf32>
    %77 = vector.broadcast %76 : vector<1x128xf32> to vector<64x128xf32>
    %78 = arith.addf %75, %77 : vector<64x128xf32>
    %79 = vector.shape_cast %78 : vector<64x128xf32> to vector<4x16x128xf32>
    %c0_89 = arith.constant 0 : index
    %c0_90 = arith.constant 0 : index
    %c0_91 = arith.constant 0 : index
    %80 = vector.load %arg7[%c0_89, %c0_90, %c0_91] : memref<4x16x128xf32, #tpu.memory_space<vmem>>, vector<4x16x128xf32>
    tpu.vector_store %arg7[%c0_89, %c0_90, %c0_91], %79 {strides = array<i32>} : memref<4x16x128xf32, #tpu.memory_space<vmem>>, vector<4x16x128xf32>,
    return
  }
  func.func @transform_0(%arg0: i32) -> (i32, i32, i32) {
    %c0_i32 = arith.constant 0 : i32
    %c0_i32_0 = arith.constant 0 : i32
    %c0_i32_1 = arith.constant 0 : i32
    return %arg0, %c0_i32, %c0_i32_0 : i32, i32, i32
  }
  func.func @transform_1(%arg0: i32) -> (i32, i32, i32) {
    %c0_i32 = arith.constant 0 : i32
    %c0_i32_0 = arith.constant 0 : i32
    %c0_i32_1 = arith.constant 0 : i32
    %c0_i32_2 = arith.constant 0 : i32
    return %c0_i32, %c0_i32_0, %c0_i32_1 : i32, i32, i32
  }
  func.func @transform_2(%arg0: i32) -> (i32, i32) {
    %c0_i32 = arith.constant 0 : i32
    %c0_i32_0 = arith.constant 0 : i32
    %c0_i32_1 = arith.constant 0 : i32
    return %c0_i32, %c0_i32_0 : i32, i32
  }
  func.func @transform_3(%arg0: i32) -> (i32, i32) {
    %c0_i32 = arith.constant 0 : i32
    %c0_i32_0 = arith.constant 0 : i32
    %c0_i32_1 = arith.constant 0 : i32
    return %c0_i32, %c0_i32_0 : i32, i32
  }
  func.func @transform_4(%arg0: i32) -> (i32, i32) {
    %c0_i32 = arith.constant 0 : i32
    %c0_i32_0 = arith.constant 0 : i32
    %c0_i32_1 = arith.constant 0 : i32
    return %c0_i32, %c0_i32_0 : i32, i32
  }
  func.func @transform_5(%arg0: i32) -> (i32, i32) {
    %c0_i32 = arith.constant 0 : i32
    %c0_i32_0 = arith.constant 0 : i32
    %c0_i32_1 = arith.constant 0 : i32
    return %c0_i32, %c0_i32_0 : i32, i32
  }
  func.func @transform_6(%arg0: i32) -> (i32, i32, i32) {
    %c0_i32 = arith.constant 0 : i32
    %c0_i32_0 = arith.constant 0 : i32
    %c0_i32_1 = arith.constant 0 : i32
    return %arg0, %c0_i32, %c0_i32_0 : i32, i32, i32
  }
}

</mosaic_0001>

<llo_original>
// kernel: tpu_custom_call.1
$region0: #{tpu_custom_call.1}
  #allocation0 [shape = 'u32[]', space=smem, size = 0x4, offset = 0x4, fixed_abs, tag = 'smem constant byte address 0x4 - core index']
  #allocation1 [shape = 'u32[144,128]{1,0:T(1,128)}', space=vmem, size = 0x12000, scoped, tag = 'internal scratch']
  #allocation2 [shape = 'f32[64,64]{1,0:T(8,128)}', space=vmem, size = 0x8000, scoped, tag = 'scratch operand']
  %s0 = inlined_call_operand.hbm [shape: bf16[8,16,16], index: 0, kind: input, shape index: {}]
  %s1 = inlined_call_operand.hbm [shape: bf16[2,16,16], index: 1, kind: input, shape index: {}]
  %s2 = inlined_call_operand.hbm [shape: bf16[64,128], index: 2, kind: input, shape index: {}]
  %s3 = inlined_call_operand.vmem [shape: f32[1,128], index: 3, kind: input, shape index: {}]
  %s4 = inlined_call_operand.hbm [shape: bf16[128,128], index: 4, kind: input, shape index: {}]
  %s5 = inlined_call_operand.vmem [shape: f32[1,128], index: 5, kind: input, shape index: {}]
  %s6 = inlined_call_operand.hbm [shape: f32[8,16,128], index: 6, kind: output, shape index: {}]
  %s7 = sld [smem:[#allocation0]]
  $region73: #{tpu_custom_call.1} parent=0
    _
  %s9 = ssub.s32 1, %s7
  %s10 = scalar_select 0, %s9, %s7
  $region1: #{tpu_custom_call.1} parent=0
    #allocation3 [shape = 'u8[32768]{0}', space=vmem, size = 0x8000, scoped, tag = 'input window, operand 0']
    #allocation4 [shape = 's32[2]{0}', space=sflag, size = 0x8, scoped, tag = 'scoped memory for tpu_custom_call.1']
    #allocation5 [shape = 's32[2]{0}', space=sflag, size = 0x8, scoped, tag = 'scoped memory for tpu_custom_call.1']
    #allocation6 [shape = 'u8[8192]{0}', space=vmem, size = 0x2000, scoped, tag = 'input window, operand 1, single buffered']
    #allocation7 [shape = 's32[1]{0}', space=sflag, size = 0x4, scoped, tag = 'scoped memory for tpu_custom_call.1']
    #allocation8 [shape = 'u8[16384]{0}', space=vmem, size = 0x4000, scoped, tag = 'input window, operand 2, single buffered']
    #allocation9 [shape = 'u8[32768]{0}', space=vmem, size = 0x8000, scoped, tag = 'input window, operand 4, single buffered']
    #allocation10 [shape = 's32[1]{0}', space=sflag, size = 0x4, scoped, tag = 'scoped memory for tpu_custom_call.1']
    #allocation11 [shape = 'u8[65536]{0}', space=vmem, size = 0x10000, scoped, tag = 'output window, operand 0']
    %11 = vsyncpa [#allocation4], 0
    %s12 = scalar_lea.sflag [#allocation4], 1
    %13 = vsyncpa %s12, 0
    %14 = vsyncpa [#allocation7], 0
    %15 = vsyncpa [#allocation10], 0
    %16 = vsyncpa [#allocation5], 0
    %s17 = scalar_lea.sflag [#allocation5], 1
    %18 = vsyncpa %s17, 0
    loop: start=0, step=1, limit=4
    $region2: #{tpu_custom_call.1} parent=1 // loop_pre_header
      _
    $region3: #{tpu_custom_call.1} parent=1 // loop_header
      %s20 = sphi 0, %s24
      %p21 = scmp.ge.s32.totalorder %s20, 4
      %s30 = sphi 0, %s32
      %s33 = sphi 0, %s30
      %s34 = sphi 0, %s33
      %s50 = sphi 0, %s34
      %s54 = sphi 0, %s54
      %s56 = sphi 0, %s54
      %s57 = sphi 0, %s56
      %s71 = sphi 0, %s57
      %s75 = sphi 0, %s75
      %s77 = sphi 0, %s75
      %s78 = sphi 0, %s77
      %s92 = sphi 0, %s78
      %s96 = sphi 0, %s96
      %s98 = sphi 0, %s96
      %s99 = sphi 0, %s98
      %s113 = sphi 0, %s99
      %s117 = sphi 0, %s117
      %s119 = sphi 0, %s117
      %s120 = sphi 0, %s119
      %s134 = sphi 0, %s120
      %s138 = sphi 0, %s138
      %s140 = sphi 0, %s138
      %s141 = sphi 0, %s140
      %s155 = sphi 0, %s141
      %s161 = sphi 0, %s163
      %s164 = sphi 0, %s161
      %s165 = sphi 0, %s164
      %s181 = sphi 0, %s165
    $region4: #{tpu_custom_call.1} parent=1 // loop_header_branch
      %23 = sbr.rel (%p21) target = $region8
    $region5: #{tpu_custom_call.1} parent=1 // loop_body
      %s25 = ssub.s32 %s20, 1
      %s26 = ssub.s32 %s20, 2
      %s27 = sadd.s32 %s20, 1
      %s28 = ssub.s32 %s20, %s27
      %p29 = scmp.eq.s32.totalorder %s28, 0
      %s31 = sadd.s32 %s30, 1
      %s32 = scalar_select %p29, %s30, %s31
      %p35 = pneg %p29
      %p36 = scmp.eq.s32.totalorder %s20, 1
      %p37 = por %p35, %p36
      %p38 = scmp.ne.s32.totalorder %s30, %s33
      %p39 = scmp.eq.s32.totalorder %s20, 0
      %p40 = por %p38, %p39
      %p41 = scmp.ne.s32.totalorder %s30, %s33
      %p42 = scmp.eq.s32.totalorder %s25, 1
      %p43 = por %p41, %p42
      %p44 = scmp.ne.s32.totalorder %s33, %s34
      %p45 = scmp.eq.s32.totalorder %s25, 0
      %p46 = por %p44, %p45
      %p47 = scmp.ne.s32.totalorder %s33, %s34
      %p48 = scmp.eq.s32.totalorder %s26, 1
      %p49 = por %p47, %p48
      %p51 = scmp.ne.s32.totalorder %s34, %s50
      %p52 = scmp.eq.s32.totalorder %s26, 0
      %p53 = por %p51, %p52
      %s55 = sadd.s32 %s54, 1
      %p58 = scmp.eq.s32.totalorder %s20, 1
      %p59 = scmp.ne.s32.totalorder %s54, %s56
      %p60 = scmp.eq.s32.totalorder %s20, 0
      %p61 = por %p59, %p60
      %p62 = scmp.ne.s32.totalorder %s54, %s56
      %p63 = scmp.eq.s32.totalorder %s25, 1
      %p64 = por %p62, %p63
      %p65 = scmp.ne.s32.totalorder %s56, %s57
      %p66 = scmp.eq.s32.totalorder %s25, 0
      %p67 = por %p65, %p66
      %p68 = scmp.ne.s32.totalorder %s56, %s57
      %p69 = scmp.eq.s32.totalorder %s26, 1
      %p70 = por %p68, %p69
      %p72 = scmp.ne.s32.totalorder %s57, %s71
      %p73 = scmp.eq.s32.totalorder %s26, 0
      %p74 = por %p72, %p73
      %s76 = sadd.s32 %s75, 1
      %p79 = scmp.eq.s32.totalorder %s20, 1
      %p80 = scmp.ne.s32.totalorder %s75, %s77
      %p81 = scmp.eq.s32.totalorder %s20, 0
      %p82 = por %p80, %p81
      %p83 = scmp.ne.s32.totalorder %s75, %s77
      %p84 = scmp.eq.s32.totalorder %s25, 1
      %p85 = por %p83, %p84
      %p86 = scmp.ne.s32.totalorder %s77, %s78
      %p87 = scmp.eq.s32.totalorder %s25, 0
      %p88 = por %p86, %p87
      %p89 = scmp.ne.s32.totalorder %s77, %s78
      %p90 = scmp.eq.s32.totalorder %s26, 1
      %p91 = por %p89, %p90
      %p93 = scmp.ne.s32.totalorder %s78, %s92
      %p94 = scmp.eq.s32.totalorder %s26, 0
      %p95 = por %p93, %p94
      %s97 = sadd.s32 %s96, 1
      %p100 = scmp.eq.s32.totalorder %s20, 1
      %p101 = scmp.ne.s32.totalorder %s96, %s98
      %p102 = scmp.eq.s32.totalorder %s20, 0
      %p103 = por %p101, %p102
      %p104 = scmp.ne.s32.totalorder %s96, %s98
      %p105 = scmp.eq.s32.totalorder %s25, 1
      %p106 = por %p104, %p105
      %p107 = scmp.ne.s32.totalorder %s98, %s99
      %p108 = scmp.eq.s32.totalorder %s25, 0
      %p109 = por %p107, %p108
      %p110 = scmp.ne.s32.totalorder %s98, %s99
      %p111 = scmp.eq.s32.totalorder %s26, 1
      %p112 = por %p110, %p111
      %p114 = scmp.ne.s32.totalorder %s99, %s113
      %p115 = scmp.eq.s32.totalorder %s26, 0
      %p116 = por %p114, %p115
      %s118 = sadd.s32 %s117, 1
      %p121 = scmp.eq.s32.totalorder %s20, 1
      %p122 = scmp.ne.s32.totalorder %s117, %s119
      %p123 = scmp.eq.s32.totalorder %s20, 0
      %p124 = por %p122, %p123
      %p125 = scmp.ne.s32.totalorder %s117, %s119
      %p126 = scmp.eq.s32.totalorder %s25, 1
      %p127 = por %p125, %p126
      %p128 = scmp.ne.s32.totalorder %s119, %s120
      %p129 = scmp.eq.s32.totalorder %s25, 0
      %p130 = por %p128, %p129
      %p131 = scmp.ne.s32.totalorder %s119, %s120
      %p132 = scmp.eq.s32.totalorder %s26, 1
      %p133 = por %p131, %p132
      %p135 = scmp.ne.s32.totalorder %s120, %s134
      %p136 = scmp.eq.s32.totalorder %s26, 0
      %p137 = por %p135, %p136
      %s139 = sadd.s32 %s138, 1
      %p142 = scmp.eq.s32.totalorder %s20, 1
      %p143 = scmp.ne.s32.totalorder %s138, %s140
      %p144 = scmp.eq.s32.totalorder %s20, 0
      %p145 = por %p143, %p144
      %p146 = scmp.ne.s32.totalorder %s138, %s140
      %p147 = scmp.eq.s32.totalorder %s25, 1
      %p148 = por %p146, %p147
      %p149 = scmp.ne.s32.totalorder %s140, %s141
      %p150 = scmp.eq.s32.totalorder %s25, 0
      %p151 = por %p149, %p150
      %p152 = scmp.ne.s32.totalorder %s140, %s141
      %p153 = scmp.eq.s32.totalorder %s26, 1
      %p154 = por %p152, %p153
      %p156 = scmp.ne.s32.totalorder %s141, %s155
      %p157 = scmp.eq.s32.totalorder %s26, 0
      %p158 = por %p156, %p157
      %s159 = ssub.s32 %s20, %s27
      %p160 = scmp.eq.s32.totalorder %s159, 0
      %s162 = sadd.s32 %s161, 1
      %s163 = scalar_select %p160, %s161, %s162
      %p166 = pneg %p160
      %p167 = scmp.eq.s32.totalorder %s20, 1
      %p168 = por %p166, %p167
      %p169 = scmp.ne.s32.totalorder %s161, %s164
      %p170 = scmp.eq.s32.totalorder %s20, 0
      %p171 = por %p169, %p170
      %p172 = scmp.ne.s32.totalorder %s161, %s164
      %p173 = scmp.eq.s32.totalorder %s25, 1
      %p174 = por %p172, %p173
      %p175 = scmp.ne.s32.totalorder %s164, %s165
      %p176 = scmp.eq.s32.totalorder %s25, 0
      %p177 = por %p175, %p176
      %p178 = scmp.ne.s32.totalorder %s164, %s165
      %p179 = scmp.eq.s32.totalorder %s26, 1
      %p180 = por %p178, %p179
      %p182 = scmp.ne.s32.totalorder %s165, %s181
      %p183 = scmp.eq.s32.totalorder %s26, 0
      %p184 = por %p182, %p183
      %p185 = scmp.le.s32.totalorder 1, %s20
      %p186 = scmp.lt.s32.totalorder %s20, 3
      %p187 = pnand %p185, %p186
      %p188 = pneg %p187
      // Predicated region
      $region9: #{tpu_custom_call.1} parent=5 // pred_check
        _
      $region10: #{tpu_custom_call.1} parent=5 // pred_check_branch
        %190 = sbr.rel (%p187) target = $region12
      $region11: #{tpu_custom_call.1} parent=5 // pred_region
        %s191 = ssub.s32 %s20, 1
        // Predicated region
        $region13: #{tpu_custom_call.1} parent=11 // pred_check
          %p192 = pneg %p67
        $region14: #{tpu_custom_call.1} parent=11 // pred_check_branch
          %194 = sbr.rel (%p192) target = $region16
        $region15: #{tpu_custom_call.1} parent=11 // pred_region
          %s196 = ssub.s32 256, 256
          %197 = vsyncadd [#allocation7], %s196
          %s198 = sshll.u32 [#allocation6], 4
          %s199 = int_to_ptr.vmem [resolvable:$true] %s198
          %204 = dma.hbm_to_vmem [thread:$0]  %s1, 256, %s199, [#allocation7], 64, 64, 4
        $region16: #{tpu_custom_call.1} parent=11 // pred_fallthru
          _
        // Predicated region
        $region17: #{tpu_custom_call.1} parent=11 // pred_check
          %p205 = pneg %p88
        $region18: #{tpu_custom_call.1} parent=11 // pred_check_branch
          %207 = sbr.rel (%p205) target = $region20
        $region19: #{tpu_custom_call.1} parent=11 // pred_region
          %s209 = ssub.s32 512, 512
          %210 = vsyncadd [#allocation7], %s209
          %s211 = sshll.u32 [#allocation8], 4
          %s212 = int_to_ptr.vmem [resolvable:$true] %s211
          %217 = dma.hbm_to_vmem [thread:$0]  %s2, 512, %s212, [#allocation7], 64, 64, 4
        $region20: #{tpu_custom_call.1} parent=11 // pred_fallthru
          _
        // Predicated region
        $region21: #{tpu_custom_call.1} parent=11 // pred_check
          %p218 = pneg %p109
        $region22: #{tpu_custom_call.1} parent=11 // pred_check_branch
          %220 = sbr.rel (%p218) target = $region24
        $region23: #{tpu_custom_call.1} parent=11 // pred_region
          _
        $region24: #{tpu_custom_call.1} parent=11 // pred_fallthru
          _
        // Predicated region
        $region25: #{tpu_custom_call.1} parent=11 // pred_check
          %p221 = pneg %p130
        $region26: #{tpu_custom_call.1} parent=11 // pred_check_branch
          %223 = sbr.rel (%p221) target = $region28
        $region27: #{tpu_custom_call.1} parent=11 // pred_region
          %s225 = ssub.s32 1024, 1024
          %226 = vsyncadd [#allocation10], %s225
          %s227 = sshll.u32 [#allocation9], 4
          %s228 = int_to_ptr.vmem [resolvable:$true] %s227
          %233 = dma.hbm_to_vmem [thread:$0]  %s4, 1024, %s228, [#allocation10], 64, 64, 4
        $region28: #{tpu_custom_call.1} parent=11 // pred_fallthru
          _
        // Predicated region
        $region29: #{tpu_custom_call.1} parent=11 // pred_check
          %p234 = pneg %p151
        $region30: #{tpu_custom_call.1} parent=11 // pred_check_branch
          %236 = sbr.rel (%p234) target = $region32
        $region31: #{tpu_custom_call.1} parent=11 // pred_region
          _
        $region32: #{tpu_custom_call.1} parent=11 // pred_fallthru
          _
      $region12: #{tpu_custom_call.1} parent=5 // pred_fallthru
        _
      %p237 = scmp.lt.s32.totalorder %s20, 2
      // Predicated region
      $region33: #{tpu_custom_call.1} parent=5 // pred_check
        %p238 = pneg %p237
      $region34: #{tpu_custom_call.1} parent=5 // pred_check_branch
        %240 = sbr.rel (%p238) target = $region36
      $region35: #{tpu_custom_call.1} parent=5 // pred_region
        // Predicated region
        $region37: #{tpu_custom_call.1} parent=35 // pred_check
          %p241 = pneg %p40
        $region38: #{tpu_custom_call.1} parent=35 // pred_check_branch
          %243 = sbr.rel (%p241) target = $region40
        $region39: #{tpu_custom_call.1} parent=35 // pred_region
          %s244 = sand.u32 %s30, 1
          %s245 = scalar_lea.sflag [#allocation4], %s244
          %s246 = sand.u32 %s30, 1
          %s247 = smul.addr %s246, 32
          %s248 = scalar_lea.vmem [#allocation3], %s247
          %s249 = smul.u32 4, %s20
          %s251 = ssub.s32 512, 512
          %252 = vsyncadd %s245, %s251
          %s253 = smul.addr %s249, 2
          %s254 = smul.addr %s253, 64
          %s255 = scalar_lea.hbm %s0, %s254
          %s256 = sshll.u32 %s248, 4
          %s257 = int_to_ptr.vmem [resolvable:$true] %s256
          %262 = dma.hbm_to_vmem [thread:$0]  %s255, 512, %s257, %s245, 64, 64, 4
        $region40: #{tpu_custom_call.1} parent=35 // pred_fallthru
          _
      $region36: #{tpu_custom_call.1} parent=5 // pred_fallthru
        _
      %p263 = scmp.le.s32.totalorder 1, %s20
      %p264 = scmp.lt.s32.totalorder %s20, 3
      %p265 = pnand %p263, %p264
      %p266 = pneg %p265
      // Predicated region
      $region41: #{tpu_custom_call.1} parent=5 // pred_check
        _
      $region42: #{tpu_custom_call.1} parent=5 // pred_check_branch
        %268 = sbr.rel (%p265) target = $region44
      $region43: #{tpu_custom_call.1} parent=5 // pred_region
        %s269 = ssub.s32 %s20, 1
        %s270 = sand.u32 %s33, 1
        %s271 = scalar_lea.sflag [#allocation4], %s270
        %s272 = sand.u32 %s33, 1
        %s273 = smul.addr %s272, 32
        %s274 = scalar_lea.vmem [#allocation3], %s273
        // Predicated region
        $region45: #{tpu_custom_call.1} parent=43 // pred_check
          %p275 = pneg %p46
        $region46: #{tpu_custom_call.1} parent=43 // pred_check_branch
          %277 = sbr.rel (%p275) target = $region48
        $region47: #{tpu_custom_call.1} parent=43 // pred_region
          %278 = dma.done %s271, 512
        $region48: #{tpu_custom_call.1} parent=43 // pred_fallthru
          _
        // Predicated region
        $region49: #{tpu_custom_call.1} parent=43 // pred_check
          %p279 = pneg %p67
        $region50: #{tpu_custom_call.1} parent=43 // pred_check_branch
          %281 = sbr.rel (%p279) target = $region52
        $region51: #{tpu_custom_call.1} parent=43 // pred_region
          %282 = dma.done [#allocation7], 256
        $region52: #{tpu_custom_call.1} parent=43 // pred_fallthru
          _
        // Predicated region
        $region53: #{tpu_custom_call.1} parent=43 // pred_check
          %p283 = pneg %p88
        $region54: #{tpu_custom_call.1} parent=43 // pred_check_branch
          %285 = sbr.rel (%p283) target = $region56
        $region55: #{tpu_custom_call.1} parent=43 // pred_region
          %286 = dma.done [#allocation7], 512
        $region56: #{tpu_custom_call.1} parent=43 // pred_fallthru
          _
        // Predicated region
        $region57: #{tpu_custom_call.1} parent=43 // pred_check
          %p287 = pneg %p130
        $region58: #{tpu_custom_call.1} parent=43 // pred_check_branch
          %289 = sbr.rel (%p287) target = $region60
        $region59: #{tpu_custom_call.1} parent=43 // pred_region
          %290 = dma.done [#allocation10], 1024
        $region60: #{tpu_custom_call.1} parent=43 // pred_fallthru
          _
        %s291 = sand.u32 %s33, 1
        %s292 = scalar_lea.sflag [#allocation4], %s291
        %s293 = sand.u32 %s33, 1
        %s294 = smul.addr %s293, 32
        %s295 = scalar_lea.vmem [#allocation3], %s294
        %p296 = pneg %p46
        %p297 = pneg %p43
        %p298 = pneg %p67
        %p299 = pneg %p64
        %p300 = pneg %p88
        %p301 = pneg %p85
        %p302 = pneg %p109
        %p303 = pneg %p106
        %p304 = pneg %p130
        %p305 = pneg %p127
        %p306 = pneg %p151
        %p307 = pneg %p148
        %p308 = pneg %p177
        %p309 = pneg %p174
        %s310 = sand.u32 %s164, 1
        %s311 = scalar_lea.sflag [#allocation5], %s310
        %s312 = sand.u32 %s164, 1
        %s313 = smul.addr %s312, 64
        %s314 = scalar_lea.vmem [#allocation11], %s313
        %s315 = smul.u32 4, %s25
        %s316 = smul.u32 4, %s25
        %v318 = vld [vmem:[%s274] sm:$0xf]
        %v319 = vld [vmem:[%s274 + $0x4] sm:$0xf]
        %v320 = vld [vmem:[#allocation6] sm:$0xf]
        %v321 = vld [vmem:[#allocation6 + $0x4] sm:$0xf]
        %v324 = vunpack.c.l.b16 %v320
        %v325 = vunpack.c.l.b16 %v321
        %v326 = vpack.c.b16 %v325, %v324
        %v329 = vunpack.c.l.b16 %v318
        %v330 = vunpack.c.l.b16 %v319
        %v331 = vpack.c.b16 %v330, %v329
        %vm333 = vcmask 130048
        %v335 = vsel %vm333, %v326, 0
        %337 = vmatprep.subr.bf16.mxu0 0
        %338 = vmatpush1.bf16.msra.mxu0 0
        %339 = vmatprep.subr.bf16.mxu0 0
        %340 = vmatpush1.bf16.msra.mxu0 0
        %341 = vmatprep.subr.bf16.mxu0 0
        %342 = vmatpush1.bf16.msra.mxu0 0
        %343 = vmatprep.subr.bf16.mxu0 0
        %344 = vmatpush1.bf16.msra.mxu0 0
        %345 = vmatprep.subr.bf16.mxu0 0
        %346 = vmatpush1.bf16.msra.mxu0 0
        %347 = vmatprep.subr.bf16.mxu0 0
        %348 = vmatpush1.bf16.msra.mxu0 0
        %349 = vmatprep.subr.bf16.mxu0 0
        %350 = vmatpush1.bf16.msra.mxu0 0
        %351 = vmatprep.subr.bf16.mxu0 0
        %352 = vmatpush1.bf16.msra.mxu0 %v331
        %353 = vmatprep.subr.bf16.mxu0 0
        %354 = vmatpush2.bf16.msra.mxu0 0
        %355 = vmatprep.subr.bf16.mxu0 0
        %356 = vmatpush2.bf16.msra.mxu0 0
        %357 = vmatprep.subr.bf16.mxu0 0
        %358 = vmatpush2.bf16.msra.mxu0 0
        %359 = vmatprep.subr.bf16.mxu0 0
        %360 = vmatpush2.bf16.msra.mxu0 0
        %361 = vmatprep.subr.bf16.mxu0 0
        %362 = vmatpush2.bf16.msra.mxu0 0
        %363 = vmatprep.subr.bf16.mxu0 0
        %364 = vmatpush2.bf16.msra.mxu0 0
        %365 = vmatprep.subr.bf16.mxu0 0
        %366 = vmatpush2.bf16.msra.mxu0 0
        %367 = vmatprep.subr.bf16.mxu0 0
        %368 = vmatpush2.bf16.msra.mxu0 0
        %369 = vmatprep.mubr.bf16.mxu0 0
        %370 = vmatmul.mubr.bf16.gmra.mxu0 %v335
        %v371 = vpop.f32.mrf.mxu0
        %v372 = vadd.f32 0.0, %v371
        %v373 = vpop.f32.mrf.mxu0
        %v374 = vpop.f32.mrf.mxu0
        %v375 = vadd.f32 0.0, %v374
        %v376 = vpop.f32.mrf.mxu0
        %377 = vdwg.mxu0
        %378 = vst.msk [vmem:[#allocation2] sm:$0xff] %vm333, %v372
        %379 = vst.msk [vmem:[#allocation2 + $0x8] sm:$0xff] %vm333, %v375
        %v380 = vpack.c.bf16 %v375, %v372
        %381 = vmatprep.subr.bf16.mxu0 0
        %382 = vmatpush1.bf16.msra.mxu0 0
        %383 = vmatprep.subr.bf16.mxu0 0
        %384 = vmatpush1.bf16.msra.mxu0 0
        %385 = vmatprep.subr.bf16.mxu0 0
        %386 = vmatpush1.bf16.msra.mxu0 0
        %387 = vmatprep.subr.bf16.mxu0 0
        %388 = vmatpush1.bf16.msra.mxu0 0
        %389 = vmatprep.subr.bf16.mxu0 0
        %390 = vmatpush1.bf16.msra.mxu0 0
        %391 = vmatprep.subr.bf16.mxu0 0
        %392 = vmatpush1.bf16.msra.mxu0 0
        %393 = vmatprep.subr.bf16.mxu0 0
        %394 = vmatpush1.bf16.msra.mxu0 0
        %395 = vmatprep.subr.bf16.mxu0 0
        %396 = vmatpush1.bf16.msra.mxu0 %v380
        %397 = vmatprep.subr.bf16.mxu0 0
        %398 = vmatpush2.bf16.msra.mxu0 0
        %399 = vmatprep.subr.bf16.mxu0 0
        %400 = vmatpush2.bf16.msra.mxu0 0
        %401 = vmatprep.subr.bf16.mxu0 0
        %402 = vmatpush2.bf16.msra.mxu0 0
        %403 = vmatprep.subr.bf16.mxu0 0
        %404 = vmatpush2.bf16.msra.mxu0 0
        %405 = vmatprep.subr.bf16.mxu0 0
        %406 = vmatpush2.bf16.msra.mxu0 0
        %407 = vmatprep.subr.bf16.mxu0 0
        %408 = vmatpush2.bf16.msra.mxu0 0
        %409 = vmatprep.subr.bf16.mxu0 0
        %410 = vmatpush2.bf16.msra.mxu0 0
        %411 = vmatprep.subr.bf16.mxu0 0
        %412 = vmatpush2.bf16.msra.mxu0 0
        %413 = vmatprep.mubr.bf16.mxu0 0
        %414 = vmatmul.mubr.bf16.gmra.mxu0 %v335
        %v415 = vpop.f32.mrf.mxu0
        %v416 = vadd.f32 0.0, %v415
        %v417 = vpop.f32.mrf.mxu0
        %v418 = vpop.f32.mrf.mxu0
        %v419 = vadd.f32 0.0, %v418
        %v420 = vpop.f32.mrf.mxu0
        %421 = vdwg.mxu0
        %424 = vrot.lane.b32.xlu0 %v416, 16
        %v425 = vpop.permute.xlu0 %424
        %426 = vrot.lane.b32.xlu0 %v419, 16
        %v427 = vpop.permute.xlu0 %426
        %vm430 = vcmask 261248
        %431 = vst.msk [vmem:[#allocation2] sm:$0xff] %vm430, %v425
        %432 = vst.msk [vmem:[#allocation2 + $0x8] sm:$0xff] %vm430, %v427
        %s433 = scalar_lea.vmem [#allocation6], 8
        %v434 = vld [vmem:[%s433] sm:$0xf]
        %v435 = vld [vmem:[%s433 + $0x4] sm:$0xf]
        %v438 = vunpack.c.l.b16 %v434
        %v439 = vunpack.c.l.b16 %v435
        %v440 = vpack.c.b16 %v439, %v438
        %v442 = vsel %vm333, %v440, 0
        %444 = vmatprep.subr.bf16.mxu0 0
        %445 = vmatpush1.bf16.msra.mxu0 0
        %446 = vmatprep.subr.bf16.mxu0 0
        %447 = vmatpush1.bf16.msra.mxu0 0
        %448 = vmatprep.subr.bf16.mxu0 0
        %449 = vmatpush1.bf16.msra.mxu0 0
        %450 = vmatprep.subr.bf16.mxu0 0
        %451 = vmatpush1.bf16.msra.mxu0 0
        %452 = vmatprep.subr.bf16.mxu0 0
        %453 = vmatpush1.bf16.msra.mxu0 0
        %454 = vmatprep.subr.bf16.mxu0 0
        %455 = vmatpush1.bf16.msra.mxu0 0
        %456 = vmatprep.subr.bf16.mxu0 0
        %457 = vmatpush1.bf16.msra.mxu0 0
        %458 = vmatprep.subr.bf16.mxu0 0
        %459 = vmatpush1.bf16.msra.mxu0 %v331
        %460 = vmatprep.subr.bf16.mxu0 0
        %461 = vmatpush2.bf16.msra.mxu0 0
        %462 = vmatprep.subr.bf16.mxu0 0
        %463 = vmatpush2.bf16.msra.mxu0 0
        %464 = vmatprep.subr.bf16.mxu0 0
        %465 = vmatpush2.bf16.msra.mxu0 0
        %466 = vmatprep.subr.bf16.mxu0 0
        %467 = vmatpush2.bf16.msra.mxu0 0
        %468 = vmatprep.subr.bf16.mxu0 0
        %469 = vmatpush2.bf16.msra.mxu0 0
        %470 = vmatprep.subr.bf16.mxu0 0
        %471 = vmatpush2.bf16.msra.mxu0 0
        %472 = vmatprep.subr.bf16.mxu0 0
        %473 = vmatpush2.bf16.msra.mxu0 0
        %474 = vmatprep.subr.bf16.mxu0 0
        %475 = vmatpush2.bf16.msra.mxu0 0
        %476 = vmatprep.mubr.bf16.mxu0 0
        %477 = vmatmul.mubr.bf16.gmra.mxu0 %v442
        %v478 = vpop.f32.mrf.mxu0
        %v479 = vadd.f32 0.0, %v478
        %v480 = vpop.f32.mrf.mxu0
        %v481 = vpop.f32.mrf.mxu0
        %v482 = vadd.f32 0.0, %v481
        %v483 = vpop.f32.mrf.mxu0
        %484 = vdwg.mxu0
        %487 = vrot.lane.b32.xlu0 %v479, 32
        %v488 = vpop.permute.xlu0 %487
        %489 = vrot.lane.b32.xlu0 %v482, 32
        %v490 = vpop.permute.xlu0 %489
        %vm493 = vcmask 392448
        %494 = vst.msk [vmem:[#allocation2] sm:$0xff] %vm493, %v488
        %495 = vst.msk [vmem:[#allocation2 + $0x8] sm:$0xff] %vm493, %v490
        %v496 = vpack.c.bf16 %v482, %v479
        %497 = vmatprep.subr.bf16.mxu0 0
        %498 = vmatpush1.bf16.msra.mxu0 0
        %499 = vmatprep.subr.bf16.mxu0 0
        %500 = vmatpush1.bf16.msra.mxu0 0
        %501 = vmatprep.subr.bf16.mxu0 0
        %502 = vmatpush1.bf16.msra.mxu0 0
        %503 = vmatprep.subr.bf16.mxu0 0
        %504 = vmatpush1.bf16.msra.mxu0 0
        %505 = vmatprep.subr.bf16.mxu0 0
        %506 = vmatpush1.bf16.msra.mxu0 0
        %507 = vmatprep.subr.bf16.mxu0 0
        %508 = vmatpush1.bf16.msra.mxu0 0
        %509 = vmatprep.subr.bf16.mxu0 0
        %510 = vmatpush1.bf16.msra.mxu0 0
        %511 = vmatprep.subr.bf16.mxu0 0
        %512 = vmatpush1.bf16.msra.mxu0 %v496
        %513 = vmatprep.subr.bf16.mxu0 0
        %514 = vmatpush2.bf16.msra.mxu0 0
        %515 = vmatprep.subr.bf16.mxu0 0
        %516 = vmatpush2.bf16.msra.mxu0 0
        %517 = vmatprep.subr.bf16.mxu0 0
        %518 = vmatpush2.bf16.msra.mxu0 0
        %519 = vmatprep.subr.bf16.mxu0 0
        %520 = vmatpush2.bf16.msra.mxu0 0
        %521 = vmatprep.subr.bf16.mxu0 0
        %522 = vmatpush2.bf16.msra.mxu0 0
        %523 = vmatprep.subr.bf16.mxu0 0
        %524 = vmatpush2.bf16.msra.mxu0 0
        %525 = vmatprep.subr.bf16.mxu0 0
        %526 = vmatpush2.bf16.msra.mxu0 0
        %527 = vmatprep.subr.bf16.mxu0 0
        %528 = vmatpush2.bf16.msra.mxu0 0
        %529 = vmatprep.mubr.bf16.mxu0 0
        %530 = vmatmul.mubr.bf16.gmra.mxu0 %v442
        %v531 = vpop.f32.mrf.mxu0
        %v532 = vadd.f32 0.0, %v531
        %v533 = vpop.f32.mrf.mxu0
        %v534 = vpop.f32.mrf.mxu0
        %v535 = vadd.f32 0.0, %v534
        %v536 = vpop.f32.mrf.mxu0
        %537 = vdwg.mxu0
        %540 = vrot.lane.b32.xlu0 %v532, 48
        %v541 = vpop.permute.xlu0 %540
        %542 = vrot.lane.b32.xlu0 %v535, 48
        %v543 = vpop.permute.xlu0 %542
        %vm546 = vcmask 523648
        %547 = vst.msk [vmem:[#allocation2] sm:$0xff] %vm546, %v541
        %548 = vst.msk [vmem:[#allocation2 + $0x8] sm:$0xff] %vm546, %v543
        %s549 = scalar_lea.vmem %s274, 8 [#allocation3]
        %v550 = vld [vmem:[%s549] sm:$0xf]
        %v551 = vld [vmem:[%s549 + $0x4] sm:$0xf]
        %v552 = vld [vmem:[#allocation6] sm:$0xf]
        %v553 = vld [vmem:[#allocation6 + $0x4] sm:$0xf]
        %v556 = vunpack.c.l.b16 %v552
        %v557 = vunpack.c.l.b16 %v553
        %v558 = vpack.c.b16 %v557, %v556
        %v561 = vunpack.c.l.b16 %v550
        %v562 = vunpack.c.l.b16 %v551
        %v563 = vpack.c.b16 %v562, %v561
        %v566 = vsel %vm333, %v558, 0
        %568 = vmatprep.subr.bf16.mxu0 0
        %569 = vmatpush1.bf16.msra.mxu0 0
        %570 = vmatprep.subr.bf16.mxu0 0
        %571 = vmatpush1.bf16.msra.mxu0 0
        %572 = vmatprep.subr.bf16.mxu0 0
        %573 = vmatpush1.bf16.msra.mxu0 0
        %574 = vmatprep.subr.bf16.mxu0 0
        %575 = vmatpush1.bf16.msra.mxu0 0
        %576 = vmatprep.subr.bf16.mxu0 0
        %577 = vmatpush1.bf16.msra.mxu0 0
        %578 = vmatprep.subr.bf16.mxu0 0
        %579 = vmatpush1.bf16.msra.mxu0 0
        %580 = vmatprep.subr.bf16.mxu0 0
        %581 = vmatpush1.bf16.msra.mxu0 0
        %582 = vmatprep.subr.bf16.mxu0 0
        %583 = vmatpush1.bf16.msra.mxu0 %v563
        %584 = vmatprep.subr.bf16.mxu0 0
        %585 = vmatpush2.bf16.msra.mxu0 0
        %586 = vmatprep.subr.bf16.mxu0 0
        %587 = vmatpush2.bf16.msra.mxu0 0
        %588 = vmatprep.subr.bf16.mxu0 0
        %589 = vmatpush2.bf16.msra.mxu0 0
        %590 = vmatprep.subr.bf16.mxu0 0
        %591 = vmatpush2.bf16.msra.mxu0 0
        %592 = vmatprep.subr.bf16.mxu0 0
        %593 = vmatpush2.bf16.msra.mxu0 0
        %594 = vmatprep.subr.bf16.mxu0 0
        %595 = vmatpush2.bf16.msra.mxu0 0
        %596 = vmatprep.subr.bf16.mxu0 0
        %597 = vmatpush2.bf16.msra.mxu0 0
        %598 = vmatprep.subr.bf16.mxu0 0
        %599 = vmatpush2.bf16.msra.mxu0 0
        %600 = vmatprep.mubr.bf16.mxu0 0
        %601 = vmatmul.mubr.bf16.gmra.mxu0 %v566
        %v602 = vpop.f32.mrf.mxu0
        %v603 = vadd.f32 0.0, %v602
        %v604 = vpop.f32.mrf.mxu0
        %v605 = vpop.f32.mrf.mxu0
        %v606 = vadd.f32 0.0, %v605
        %v607 = vpop.f32.mrf.mxu0
        %608 = vdwg.mxu0
        %609 = vst.msk [vmem:[#allocation2 + $0x10] sm:$0xff] %vm333, %v603
        %610 = vst.msk [vmem:[#allocation2 + $0x18] sm:$0xff] %vm333, %v606
        %v611 = vpack.c.bf16 %v606, %v603
        %612 = vmatprep.subr.bf16.mxu0 0
        %613 = vmatpush1.bf16.msra.mxu0 0
        %614 = vmatprep.subr.bf16.mxu0 0
        %615 = vmatpush1.bf16.msra.mxu0 0
        %616 = vmatprep.subr.bf16.mxu0 0
        %617 = vmatpush1.bf16.msra.mxu0 0
        %618 = vmatprep.subr.bf16.mxu0 0
        %619 = vmatpush1.bf16.msra.mxu0 0
        %620 = vmatprep.subr.bf16.mxu0 0
        %621 = vmatpush1.bf16.msra.mxu0 0
        %622 = vmatprep.subr.bf16.mxu0 0
        %623 = vmatpush1.bf16.msra.mxu0 0
        %624 = vmatprep.subr.bf16.mxu0 0
        %625 = vmatpush1.bf16.msra.mxu0 0
        %626 = vmatprep.subr.bf16.mxu0 0
        %627 = vmatpush1.bf16.msra.mxu0 %v611
        %628 = vmatprep.subr.bf16.mxu0 0
        %629 = vmatpush2.bf16.msra.mxu0 0
        %630 = vmatprep.subr.bf16.mxu0 0
        %631 = vmatpush2.bf16.msra.mxu0 0
        %632 = vmatprep.subr.bf16.mxu0 0
        %633 = vmatpush2.bf16.msra.mxu0 0
        %634 = vmatprep.subr.bf16.mxu0 0
        %635 = vmatpush2.bf16.msra.mxu0 0
        %636 = vmatprep.subr.bf16.mxu0 0
        %637 = vmatpush2.bf16.msra.mxu0 0
        %638 = vmatprep.subr.bf16.mxu0 0
        %639 = vmatpush2.bf16.msra.mxu0 0
        %640 = vmatprep.subr.bf16.mxu0 0
        %641 = vmatpush2.bf16.msra.mxu0 0
        %642 = vmatprep.subr.bf16.mxu0 0
        %643 = vmatpush2.bf16.msra.mxu0 0
        %644 = vmatprep.mubr.bf16.mxu0 0
        %645 = vmatmul.mubr.bf16.gmra.mxu0 %v566
        %v646 = vpop.f32.mrf.mxu0
        %v647 = vadd.f32 0.0, %v646
        %v648 = vpop.f32.mrf.mxu0
        %v649 = vpop.f32.mrf.mxu0
        %v650 = vadd.f32 0.0, %v649
        %v651 = vpop.f32.mrf.mxu0
        %652 = vdwg.mxu0
        %655 = vrot.lane.b32.xlu0 %v647, 16
        %v656 = vpop.permute.xlu0 %655
        %657 = vrot.lane.b32.xlu0 %v650, 16
        %v658 = vpop.permute.xlu0 %657
        %661 = vst.msk [vmem:[#allocation2 + $0x10] sm:$0xff] %vm430, %v656
        %662 = vst.msk [vmem:[#allocation2 + $0x18] sm:$0xff] %vm430, %v658
        %v663 = vld [vmem:[%s433] sm:$0xf]
        %v664 = vld [vmem:[%s433 + $0x4] sm:$0xf]
        %v667 = vunpack.c.l.b16 %v663
        %v668 = vunpack.c.l.b16 %v664
        %v669 = vpack.c.b16 %v668, %v667
        %v671 = vsel %vm333, %v669, 0
        %673 = vmatprep.subr.bf16.mxu0 0
        %674 = vmatpush1.bf16.msra.mxu0 0
        %675 = vmatprep.subr.bf16.mxu0 0
        %676 = vmatpush1.bf16.msra.mxu0 0
        %677 = vmatprep.subr.bf16.mxu0 0
        %678 = vmatpush1.bf16.msra.mxu0 0
        %679 = vmatprep.subr.bf16.mxu0 0
        %680 = vmatpush1.bf16.msra.mxu0 0
        %681 = vmatprep.subr.bf16.mxu0 0
        %682 = vmatpush1.bf16.msra.mxu0 0
        %683 = vmatprep.subr.bf16.mxu0 0
        %684 = vmatpush1.bf16.msra.mxu0 0
        %685 = vmatprep.subr.bf16.mxu0 0
        %686 = vmatpush1.bf16.msra.mxu0 0
        %687 = vmatprep.subr.bf16.mxu0 0
        %688 = vmatpush1.bf16.msra.mxu0 %v563
        %689 = vmatprep.subr.bf16.mxu0 0
        %690 = vmatpush2.bf16.msra.mxu0 0
        %691 = vmatprep.subr.bf16.mxu0 0
        %692 = vmatpush2.bf16.msra.mxu0 0
        %693 = vmatprep.subr.bf16.mxu0 0
        %694 = vmatpush2.bf16.msra.mxu0 0
        %695 = vmatprep.subr.bf16.mxu0 0
        %696 = vmatpush2.bf16.msra.mxu0 0
        %697 = vmatprep.subr.bf16.mxu0 0
        %698 = vmatpush2.bf16.msra.mxu0 0
        %699 = vmatprep.subr.bf16.mxu0 0
        %700 = vmatpush2.bf16.msra.mxu0 0
        %701 = vmatprep.subr.bf16.mxu0 0
        %702 = vmatpush2.bf16.msra.mxu0 0
        %703 = vmatprep.subr.bf16.mxu0 0
        %704 = vmatpush2.bf16.msra.mxu0 0
        %705 = vmatprep.mubr.bf16.mxu0 0
        %706 = vmatmul.mubr.bf16.gmra.mxu0 %v671
        %v707 = vpop.f32.mrf.mxu0
        %v708 = vadd.f32 0.0, %v707
        %v709 = vpop.f32.mrf.mxu0
        %v710 = vpop.f32.mrf.mxu0
        %v711 = vadd.f32 0.0, %v710
        %v712 = vpop.f32.mrf.mxu0
        %713 = vdwg.mxu0
        %716 = vrot.lane.b32.xlu0 %v708, 32
        %v717 = vpop.permute.xlu0 %716
        %718 = vrot.lane.b32.xlu0 %v711, 32
        %v719 = vpop.permute.xlu0 %718
        %722 = vst.msk [vmem:[#allocation2 + $0x10] sm:$0xff] %vm493, %v717
        %723 = vst.msk [vmem:[#allocation2 + $0x18] sm:$0xff] %vm493, %v719
        %v724 = vpack.c.bf16 %v711, %v708
        %725 = vmatprep.subr.bf16.mxu0 0
        %726 = vmatpush1.bf16.msra.mxu0 0
        %727 = vmatprep.subr.bf16.mxu0 0
        %728 = vmatpush1.bf16.msra.mxu0 0
        %729 = vmatprep.subr.bf16.mxu0 0
        %730 = vmatpush1.bf16.msra.mxu0 0
        %731 = vmatprep.subr.bf16.mxu0 0
        %732 = vmatpush1.bf16.msra.mxu0 0
        %733 = vmatprep.subr.bf16.mxu0 0
        %734 = vmatpush1.bf16.msra.mxu0 0
        %735 = vmatprep.subr.bf16.mxu0 0
        %736 = vmatpush1.bf16.msra.mxu0 0
        %737 = vmatprep.subr.bf16.mxu0 0
        %738 = vmatpush1.bf16.msra.mxu0 0
        %739 = vmatprep.subr.bf16.mxu0 0
        %740 = vmatpush1.bf16.msra.mxu0 %v724
        %741 = vmatprep.subr.bf16.mxu0 0
        %742 = vmatpush2.bf16.msra.mxu0 0
        %743 = vmatprep.subr.bf16.mxu0 0
        %744 = vmatpush2.bf16.msra.mxu0 0
        %745 = vmatprep.subr.bf16.mxu0 0
        %746 = vmatpush2.bf16.msra.mxu0 0
        %747 = vmatprep.subr.bf16.mxu0 0
        %748 = vmatpush2.bf16.msra.mxu0 0
        %749 = vmatprep.subr.bf16.mxu0 0
        %750 = vmatpush2.bf16.msra.mxu0 0
        %751 = vmatprep.subr.bf16.mxu0 0
        %752 = vmatpush2.bf16.msra.mxu0 0
        %753 = vmatprep.subr.bf16.mxu0 0
        %754 = vmatpush2.bf16.msra.mxu0 0
        %755 = vmatprep.subr.bf16.mxu0 0
        %756 = vmatpush2.bf16.msra.mxu0 0
        %757 = vmatprep.mubr.bf16.mxu0 0
        %758 = vmatmul.mubr.bf16.gmra.mxu0 %v671
        %v759 = vpop.f32.mrf.mxu0
        %v760 = vadd.f32 0.0, %v759
        %v761 = vpop.f32.mrf.mxu0
        %v762 = vpop.f32.mrf.mxu0
        %v763 = vadd.f32 0.0, %v762
        %v764 = vpop.f32.mrf.mxu0
        %765 = vdwg.mxu0
        %768 = vrot.lane.b32.xlu0 %v760, 48
        %v769 = vpop.permute.xlu0 %768
        %770 = vrot.lane.b32.xlu0 %v763, 48
        %v771 = vpop.permute.xlu0 %770
        %774 = vst.msk [vmem:[#allocation2 + $0x10] sm:$0xff] %vm546, %v769
        %775 = vst.msk [vmem:[#allocation2 + $0x18] sm:$0xff] %vm546, %v771
        %s776 = scalar_lea.vmem %s274, 16 [#allocation3]
        %v777 = vld [vmem:[%s776] sm:$0xf]
        %v778 = vld [vmem:[%s776 + $0x4] sm:$0xf]
        %v779 = vld [vmem:[#allocation6] sm:$0xf]
        %v780 = vld [vmem:[#allocation6 + $0x4] sm:$0xf]
        %v783 = vunpack.c.l.b16 %v779
        %v784 = vunpack.c.l.b16 %v780
        %v785 = vpack.c.b16 %v784, %v783
        %v788 = vunpack.c.l.b16 %v777
        %v789 = vunpack.c.l.b16 %v778
        %v790 = vpack.c.b16 %v789, %v788
        %v793 = vsel %vm333, %v785, 0
        %795 = vmatprep.subr.bf16.mxu0 0
        %796 = vmatpush1.bf16.msra.mxu0 0
        %797 = vmatprep.subr.bf16.mxu0 0
        %798 = vmatpush1.bf16.msra.mxu0 0
        %799 = vmatprep.subr.bf16.mxu0 0
        %800 = vmatpush1.bf16.msra.mxu0 0
        %801 = vmatprep.subr.bf16.mxu0 0
        %802 = vmatpush1.bf16.msra.mxu0 0
        %803 = vmatprep.subr.bf16.mxu0 0
        %804 = vmatpush1.bf16.msra.mxu0 0
        %805 = vmatprep.subr.bf16.mxu0 0
        %806 = vmatpush1.bf16.msra.mxu0 0
        %807 = vmatprep.subr.bf16.mxu0 0
        %808 = vmatpush1.bf16.msra.mxu0 0
        %809 = vmatprep.subr.bf16.mxu0 0
        %810 = vmatpush1.bf16.msra.mxu0 %v790
        %811 = vmatprep.subr.bf16.mxu0 0
        %812 = vmatpush2.bf16.msra.mxu0 0
        %813 = vmatprep.subr.bf16.mxu0 0
        %814 = vmatpush2.bf16.msra.mxu0 0
        %815 = vmatprep.subr.bf16.mxu0 0
        %816 = vmatpush2.bf16.msra.mxu0 0
        %817 = vmatprep.subr.bf16.mxu0 0
        %818 = vmatpush2.bf16.msra.mxu0 0
        %819 = vmatprep.subr.bf16.mxu0 0
        %820 = vmatpush2.bf16.msra.mxu0 0
        %821 = vmatprep.subr.bf16.mxu0 0
        %822 = vmatpush2.bf16.msra.mxu0 0
        %823 = vmatprep.subr.bf16.mxu0 0
        %824 = vmatpush2.bf16.msra.mxu0 0
        %825 = vmatprep.subr.bf16.mxu0 0
        %826 = vmatpush2.bf16.msra.mxu0 0
        %827 = vmatprep.mubr.bf16.mxu0 0
        %828 = vmatmul.mubr.bf16.gmra.mxu0 %v793
        %v829 = vpop.f32.mrf.mxu0
        %v830 = vadd.f32 0.0, %v829
        %v831 = vpop.f32.mrf.mxu0
        %v832 = vpop.f32.mrf.mxu0
        %v833 = vadd.f32 0.0, %v832
        %v834 = vpop.f32.mrf.mxu0
        %835 = vdwg.mxu0
        %836 = vst.msk [vmem:[#allocation2 + $0x20] sm:$0xff] %vm333, %v830
        %837 = vst.msk [vmem:[#allocation2 + $0x28] sm:$0xff] %vm333, %v833
        %v838 = vpack.c.bf16 %v833, %v830
        %839 = vmatprep.subr.bf16.mxu0 0
        %840 = vmatpush1.bf16.msra.mxu0 0
        %841 = vmatprep.subr.bf16.mxu0 0
        %842 = vmatpush1.bf16.msra.mxu0 0
        %843 = vmatprep.subr.bf16.mxu0 0
        %844 = vmatpush1.bf16.msra.mxu0 0
        %845 = vmatprep.subr.bf16.mxu0 0
        %846 = vmatpush1.bf16.msra.mxu0 0
        %847 = vmatprep.subr.bf16.mxu0 0
        %848 = vmatpush1.bf16.msra.mxu0 0
        %849 = vmatprep.subr.bf16.mxu0 0
        %850 = vmatpush1.bf16.msra.mxu0 0
        %851 = vmatprep.subr.bf16.mxu0 0
        %852 = vmatpush1.bf16.msra.mxu0 0
        %853 = vmatprep.subr.bf16.mxu0 0
        %854 = vmatpush1.bf16.msra.mxu0 %v838
        %855 = vmatprep.subr.bf16.mxu0 0
        %856 = vmatpush2.bf16.msra.mxu0 0
        %857 = vmatprep.subr.bf16.mxu0 0
        %858 = vmatpush2.bf16.msra.mxu0 0
        %859 = vmatprep.subr.bf16.mxu0 0
        %860 = vmatpush2.bf16.msra.mxu0 0
        %861 = vmatprep.subr.bf16.mxu0 0
        %862 = vmatpush2.bf16.msra.mxu0 0
        %863 = vmatprep.subr.bf16.mxu0 0
        %864 = vmatpush2.bf16.msra.mxu0 0
        %865 = vmatprep.subr.bf16.mxu0 0
        %866 = vmatpush2.bf16.msra.mxu0 0
        %867 = vmatprep.subr.bf16.mxu0 0
        %868 = vmatpush2.bf16.msra.mxu0 0
        %869 = vmatprep.subr.bf16.mxu0 0
        %870 = vmatpush2.bf16.msra.mxu0 0
        %871 = vmatprep.mubr.bf16.mxu0 0
        %872 = vmatmul.mubr.bf16.gmra.mxu0 %v793
        %v873 = vpop.f32.mrf.mxu0
        %v874 = vadd.f32 0.0, %v873
        %v875 = vpop.f32.mrf.mxu0
        %v876 = vpop.f32.mrf.mxu0
        %v877 = vadd.f32 0.0, %v876
        %v878 = vpop.f32.mrf.mxu0
        %879 = vdwg.mxu0
        %882 = vrot.lane.b32.xlu0 %v874, 16
        %v883 = vpop.permute.xlu0 %882
        %884 = vrot.lane.b32.xlu0 %v877, 16
        %v885 = vpop.permute.xlu0 %884
        %888 = vst.msk [vmem:[#allocation2 + $0x20] sm:$0xff] %vm430, %v883
        %889 = vst.msk [vmem:[#allocation2 + $0x28] sm:$0xff] %vm430, %v885
        %v890 = vld [vmem:[%s433] sm:$0xf]
        %v891 = vld [vmem:[%s433 + $0x4] sm:$0xf]
        %v894 = vunpack.c.l.b16 %v890
        %v895 = vunpack.c.l.b16 %v891
        %v896 = vpack.c.b16 %v895, %v894
        %v898 = vsel %vm333, %v896, 0
        %900 = vmatprep.subr.bf16.mxu0 0
        %901 = vmatpush1.bf16.msra.mxu0 0
        %902 = vmatprep.subr.bf16.mxu0 0
        %903 = vmatpush1.bf16.msra.mxu0 0
        %904 = vmatprep.subr.bf16.mxu0 0
        %905 = vmatpush1.bf16.msra.mxu0 0
        %906 = vmatprep.subr.bf16.mxu0 0
        %907 = vmatpush1.bf16.msra.mxu0 0
        %908 = vmatprep.subr.bf16.mxu0 0
        %909 = vmatpush1.bf16.msra.mxu0 0
        %910 = vmatprep.subr.bf16.mxu0 0
        %911 = vmatpush1.bf16.msra.mxu0 0
        %912 = vmatprep.subr.bf16.mxu0 0
        %913 = vmatpush1.bf16.msra.mxu0 0
        %914 = vmatprep.subr.bf16.mxu0 0
        %915 = vmatpush1.bf16.msra.mxu0 %v790
        %916 = vmatprep.subr.bf16.mxu0 0
        %917 = vmatpush2.bf16.msra.mxu0 0
        %918 = vmatprep.subr.bf16.mxu0 0
        %919 = vmatpush2.bf16.msra.mxu0 0
        %920 = vmatprep.subr.bf16.mxu0 0
        %921 = vmatpush2.bf16.msra.mxu0 0
        %922 = vmatprep.subr.bf16.mxu0 0
        %923 = vmatpush2.bf16.msra.mxu0 0
        %924 = vmatprep.subr.bf16.mxu0 0
        %925 = vmatpush2.bf16.msra.mxu0 0
        %926 = vmatprep.subr.bf16.mxu0 0
        %927 = vmatpush2.bf16.msra.mxu0 0
        %928 = vmatprep.subr.bf16.mxu0 0
        %929 = vmatpush2.bf16.msra.mxu0 0
        %930 = vmatprep.subr.bf16.mxu0 0
        %931 = vmatpush2.bf16.msra.mxu0 0
        %932 = vmatprep.mubr.bf16.mxu0 0
        %933 = vmatmul.mubr.bf16.gmra.mxu0 %v898
        %v934 = vpop.f32.mrf.mxu0
        %v935 = vadd.f32 0.0, %v934
        %v936 = vpop.f32.mrf.mxu0
        %v937 = vpop.f32.mrf.mxu0
        %v938 = vadd.f32 0.0, %v937
        %v939 = vpop.f32.mrf.mxu0
        %940 = vdwg.mxu0
        %943 = vrot.lane.b32.xlu0 %v935, 32
        %v944 = vpop.permute.xlu0 %943
        %945 = vrot.lane.b32.xlu0 %v938, 32
        %v946 = vpop.permute.xlu0 %945
        %949 = vst.msk [vmem:[#allocation2 + $0x20] sm:$0xff] %vm493, %v944
        %950 = vst.msk [vmem:[#allocation2 + $0x28] sm:$0xff] %vm493, %v946
        %v951 = vpack.c.bf16 %v938, %v935
        %952 = vmatprep.subr.bf16.mxu0 0
        %953 = vmatpush1.bf16.msra.mxu0 0
        %954 = vmatprep.subr.bf16.mxu0 0
        %955 = vmatpush1.bf16.msra.mxu0 0
        %956 = vmatprep.subr.bf16.mxu0 0
        %957 = vmatpush1.bf16.msra.mxu0 0
        %958 = vmatprep.subr.bf16.mxu0 0
        %959 = vmatpush1.bf16.msra.mxu0 0
        %960 = vmatprep.subr.bf16.mxu0 0
        %961 = vmatpush1.bf16.msra.mxu0 0
        %962 = vmatprep.subr.bf16.mxu0 0
        %963 = vmatpush1.bf16.msra.mxu0 0
        %964 = vmatprep.subr.bf16.mxu0 0
        %965 = vmatpush1.bf16.msra.mxu0 0
        %966 = vmatprep.subr.bf16.mxu0 0
        %967 = vmatpush1.bf16.msra.mxu0 %v951
        %968 = vmatprep.subr.bf16.mxu0 0
        %969 = vmatpush2.bf16.msra.mxu0 0
        %970 = vmatprep.subr.bf16.mxu0 0
        %971 = vmatpush2.bf16.msra.mxu0 0
        %972 = vmatprep.subr.bf16.mxu0 0
        %973 = vmatpush2.bf16.msra.mxu0 0
        %974 = vmatprep.subr.bf16.mxu0 0
        %975 = vmatpush2.bf16.msra.mxu0 0
        %976 = vmatprep.subr.bf16.mxu0 0
        %977 = vmatpush2.bf16.msra.mxu0 0
        %978 = vmatprep.subr.bf16.mxu0 0
        %979 = vmatpush2.bf16.msra.mxu0 0
        %980 = vmatprep.subr.bf16.mxu0 0
        %981 = vmatpush2.bf16.msra.mxu0 0
        %982 = vmatprep.subr.bf16.mxu0 0
        %983 = vmatpush2.bf16.msra.mxu0 0
        %984 = vmatprep.mubr.bf16.mxu0 0
        %985 = vmatmul.mubr.bf16.gmra.mxu0 %v898
        %v986 = vpop.f32.mrf.mxu0
        %v987 = vadd.f32 0.0, %v986
        %v988 = vpop.f32.mrf.mxu0
        %v989 = vpop.f32.mrf.mxu0
        %v990 = vadd.f32 0.0, %v989
        %v991 = vpop.f32.mrf.mxu0
        %992 = vdwg.mxu0
        %995 = vrot.lane.b32.xlu0 %v987, 48
        %v996 = vpop.permute.xlu0 %995
        %997 = vrot.lane.b32.xlu0 %v990, 48
        %v998 = vpop.permute.xlu0 %997
        %1001 = vst.msk [vmem:[#allocation2 + $0x20] sm:$0xff] %vm546, %v996
        %1002 = vst.msk [vmem:[#allocation2 + $0x28] sm:$0xff] %vm546, %v998
        %s1003 = scalar_lea.vmem %s274, 24 [#allocation3]
        %v1004 = vld [vmem:[%s1003] sm:$0xf]
        %v1005 = vld [vmem:[%s1003 + $0x4] sm:$0xf]
        %v1006 = vld [vmem:[#allocation6] sm:$0xf]
        %v1007 = vld [vmem:[#allocation6 + $0x4] sm:$0xf]
        %v1010 = vunpack.c.l.b16 %v1006
        %v1011 = vunpack.c.l.b16 %v1007
        %v1012 = vpack.c.b16 %v1011, %v1010
        %v1015 = vunpack.c.l.b16 %v1004
        %v1016 = vunpack.c.l.b16 %v1005
        %v1017 = vpack.c.b16 %v1016, %v1015
        %v1020 = vsel %vm333, %v1012, 0
        %1022 = vmatprep.subr.bf16.mxu0 0
        %1023 = vmatpush1.bf16.msra.mxu0 0
        %1024 = vmatprep.subr.bf16.mxu0 0
        %1025 = vmatpush1.bf16.msra.mxu0 0
        %1026 = vmatprep.subr.bf16.mxu0 0
        %1027 = vmatpush1.bf16.msra.mxu0 0
        %1028 = vmatprep.subr.bf16.mxu0 0
        %1029 = vmatpush1.bf16.msra.mxu0 0
        %1030 = vmatprep.subr.bf16.mxu0 0
        %1031 = vmatpush1.bf16.msra.mxu0 0
        %1032 = vmatprep.subr.bf16.mxu0 0
        %1033 = vmatpush1.bf16.msra.mxu0 0
        %1034 = vmatprep.subr.bf16.mxu0 0
        %1035 = vmatpush1.bf16.msra.mxu0 0
        %1036 = vmatprep.subr.bf16.mxu0 0
        %1037 = vmatpush1.bf16.msra.mxu0 %v1017
        %1038 = vmatprep.subr.bf16.mxu0 0
        %1039 = vmatpush2.bf16.msra.mxu0 0
        %1040 = vmatprep.subr.bf16.mxu0 0
        %1041 = vmatpush2.bf16.msra.mxu0 0
        %1042 = vmatprep.subr.bf16.mxu0 0
        %1043 = vmatpush2.bf16.msra.mxu0 0
        %1044 = vmatprep.subr.bf16.mxu0 0
        %1045 = vmatpush2.bf16.msra.mxu0 0
        %1046 = vmatprep.subr.bf16.mxu0 0
        %1047 = vmatpush2.bf16.msra.mxu0 0
        %1048 = vmatprep.subr.bf16.mxu0 0
        %1049 = vmatpush2.bf16.msra.mxu0 0
        %1050 = vmatprep.subr.bf16.mxu0 0
        %1051 = vmatpush2.bf16.msra.mxu0 0
        %1052 = vmatprep.subr.bf16.mxu0 0
        %1053 = vmatpush2.bf16.msra.mxu0 0
        %1054 = vmatprep.mubr.bf16.mxu0 0
        %1055 = vmatmul.mubr.bf16.gmra.mxu0 %v1020
        %v1056 = vpop.f32.mrf.mxu0
        %v1057 = vadd.f32 0.0, %v1056
        %v1058 = vpop.f32.mrf.mxu0
        %v1059 = vpop.f32.mrf.mxu0
        %v1060 = vadd.f32 0.0, %v1059
        %v1061 = vpop.f32.mrf.mxu0
        %1062 = vdwg.mxu0
        %1063 = vst.msk [vmem:[#allocation2 + $0x30] sm:$0xff] %vm333, %v1057
        %1064 = vst.msk [vmem:[#allocation2 + $0x38] sm:$0xff] %vm333, %v1060
        %v1065 = vpack.c.bf16 %v1060, %v1057
        %1066 = vmatprep.subr.bf16.mxu0 0
        %1067 = vmatpush1.bf16.msra.mxu0 0
        %1068 = vmatprep.subr.bf16.mxu0 0
        %1069 = vmatpush1.bf16.msra.mxu0 0
        %1070 = vmatprep.subr.bf16.mxu0 0
        %1071 = vmatpush1.bf16.msra.mxu0 0
        %1072 = vmatprep.subr.bf16.mxu0 0
        %1073 = vmatpush1.bf16.msra.mxu0 0
        %1074 = vmatprep.subr.bf16.mxu0 0
        %1075 = vmatpush1.bf16.msra.mxu0 0
        %1076 = vmatprep.subr.bf16.mxu0 0
        %1077 = vmatpush1.bf16.msra.mxu0 0
        %1078 = vmatprep.subr.bf16.mxu0 0
        %1079 = vmatpush1.bf16.msra.mxu0 0
        %1080 = vmatprep.subr.bf16.mxu0 0
        %1081 = vmatpush1.bf16.msra.mxu0 %v1065
        %1082 = vmatprep.subr.bf16.mxu0 0
        %1083 = vmatpush2.bf16.msra.mxu0 0
        %1084 = vmatprep.subr.bf16.mxu0 0
        %1085 = vmatpush2.bf16.msra.mxu0 0
        %1086 = vmatprep.subr.bf16.mxu0 0
        %1087 = vmatpush2.bf16.msra.mxu0 0
        %1088 = vmatprep.subr.bf16.mxu0 0
        %1089 = vmatpush2.bf16.msra.mxu0 0
        %1090 = vmatprep.subr.bf16.mxu0 0
        %1091 = vmatpush2.bf16.msra.mxu0 0
        %1092 = vmatprep.subr.bf16.mxu0 0
        %1093 = vmatpush2.bf16.msra.mxu0 0
        %1094 = vmatprep.subr.bf16.mxu0 0
        %1095 = vmatpush2.bf16.msra.mxu0 0
        %1096 = vmatprep.subr.bf16.mxu0 0
        %1097 = vmatpush2.bf16.msra.mxu0 0
        %1098 = vmatprep.mubr.bf16.mxu0 0
        %1099 = vmatmul.mubr.bf16.gmra.mxu0 %v1020
        %v1100 = vpop.f32.mrf.mxu0
        %v1101 = vadd.f32 0.0, %v1100
        %v1102 = vpop.f32.mrf.mxu0
        %v1103 = vpop.f32.mrf.mxu0
        %v1104 = vadd.f32 0.0, %v1103
        %v1105 = vpop.f32.mrf.mxu0
        %1106 = vdwg.mxu0
        %1109 = vrot.lane.b32.xlu0 %v1101, 16
        %v1110 = vpop.permute.xlu0 %1109
        %1111 = vrot.lane.b32.xlu0 %v1104, 16
        %v1112 = vpop.permute.xlu0 %1111
        %1115 = vst.msk [vmem:[#allocation2 + $0x30] sm:$0xff] %vm430, %v1110
        %1116 = vst.msk [vmem:[#allocation2 + $0x38] sm:$0xff] %vm430, %v1112
        %v1117 = vld [vmem:[%s433] sm:$0xf]
        %v1118 = vld [vmem:[%s433 + $0x4] sm:$0xf]
        %v1121 = vunpack.c.l.b16 %v1117
        %v1122 = vunpack.c.l.b16 %v1118
        %v1123 = vpack.c.b16 %v1122, %v1121
        %v1125 = vsel %vm333, %v1123, 0
        %1127 = vmatprep.subr.bf16.mxu0 0
        %1128 = vmatpush1.bf16.msra.mxu0 0
        %1129 = vmatprep.subr.bf16.mxu0 0
        %1130 = vmatpush1.bf16.msra.mxu0 0
        %1131 = vmatprep.subr.bf16.mxu0 0
        %1132 = vmatpush1.bf16.msra.mxu0 0
        %1133 = vmatprep.subr.bf16.mxu0 0
        %1134 = vmatpush1.bf16.msra.mxu0 0
        %1135 = vmatprep.subr.bf16.mxu0 0
        %1136 = vmatpush1.bf16.msra.mxu0 0
        %1137 = vmatprep.subr.bf16.mxu0 0
        %1138 = vmatpush1.bf16.msra.mxu0 0
        %1139 = vmatprep.subr.bf16.mxu0 0
        %1140 = vmatpush1.bf16.msra.mxu0 0
        %1141 = vmatprep.subr.bf16.mxu0 0
        %1142 = vmatpush1.bf16.msra.mxu0 %v1017
        %1143 = vmatprep.subr.bf16.mxu0 0
        %1144 = vmatpush2.bf16.msra.mxu0 0
        %1145 = vmatprep.subr.bf16.mxu0 0
        %1146 = vmatpush2.bf16.msra.mxu0 0
        %1147 = vmatprep.subr.bf16.mxu0 0
        %1148 = vmatpush2.bf16.msra.mxu0 0
        %1149 = vmatprep.subr.bf16.mxu0 0
        %1150 = vmatpush2.bf16.msra.mxu0 0
        %1151 = vmatprep.subr.bf16.mxu0 0
        %1152 = vmatpush2.bf16.msra.mxu0 0
        %1153 = vmatprep.subr.bf16.mxu0 0
        %1154 = vmatpush2.bf16.msra.mxu0 0
        %1155 = vmatprep.subr.bf16.mxu0 0
        %1156 = vmatpush2.bf16.msra.mxu0 0
        %1157 = vmatprep.subr.bf16.mxu0 0
        %1158 = vmatpush2.bf16.msra.mxu0 0
        %1159 = vmatprep.mubr.bf16.mxu0 0
        %1160 = vmatmul.mubr.bf16.gmra.mxu0 %v1125
        %v1161 = vpop.f32.mrf.mxu0
        %v1162 = vadd.f32 0.0, %v1161
        %v1163 = vpop.f32.mrf.mxu0
        %v1164 = vpop.f32.mrf.mxu0
        %v1165 = vadd.f32 0.0, %v1164
        %v1166 = vpop.f32.mrf.mxu0
        %1167 = vdwg.mxu0
        %1170 = vrot.lane.b32.xlu0 %v1162, 32
        %v1171 = vpop.permute.xlu0 %1170
        %1172 = vrot.lane.b32.xlu0 %v1165, 32
        %v1173 = vpop.permute.xlu0 %1172
        %1176 = vst.msk [vmem:[#allocation2 + $0x30] sm:$0xff] %vm493, %v1171
        %1177 = vst.msk [vmem:[#allocation2 + $0x38] sm:$0xff] %vm493, %v1173
        %v1178 = vpack.c.bf16 %v1165, %v1162
        %1179 = vmatprep.subr.bf16.mxu0 0
        %1180 = vmatpush1.bf16.msra.mxu0 0
        %1181 = vmatprep.subr.bf16.mxu0 0
        %1182 = vmatpush1.bf16.msra.mxu0 0
        %1183 = vmatprep.subr.bf16.mxu0 0
        %1184 = vmatpush1.bf16.msra.mxu0 0
        %1185 = vmatprep.subr.bf16.mxu0 0
        %1186 = vmatpush1.bf16.msra.mxu0 0
        %1187 = vmatprep.subr.bf16.mxu0 0
        %1188 = vmatpush1.bf16.msra.mxu0 0
        %1189 = vmatprep.subr.bf16.mxu0 0
        %1190 = vmatpush1.bf16.msra.mxu0 0
        %1191 = vmatprep.subr.bf16.mxu0 0
        %1192 = vmatpush1.bf16.msra.mxu0 0
        %1193 = vmatprep.subr.bf16.mxu0 0
        %1194 = vmatpush1.bf16.msra.mxu0 %v1178
        %1195 = vmatprep.subr.bf16.mxu0 0
        %1196 = vmatpush2.bf16.msra.mxu0 0
        %1197 = vmatprep.subr.bf16.mxu0 0
        %1198 = vmatpush2.bf16.msra.mxu0 0
        %1199 = vmatprep.subr.bf16.mxu0 0
        %1200 = vmatpush2.bf16.msra.mxu0 0
        %1201 = vmatprep.subr.bf16.mxu0 0
        %1202 = vmatpush2.bf16.msra.mxu0 0
        %1203 = vmatprep.subr.bf16.mxu0 0
        %1204 = vmatpush2.bf16.msra.mxu0 0
        %1205 = vmatprep.subr.bf16.mxu0 0
        %1206 = vmatpush2.bf16.msra.mxu0 0
        %1207 = vmatprep.subr.bf16.mxu0 0
        %1208 = vmatpush2.bf16.msra.mxu0 0
        %1209 = vmatprep.subr.bf16.mxu0 0
        %1210 = vmatpush2.bf16.msra.mxu0 0
        %1211 = vmatprep.mubr.bf16.mxu0 0
        %1212 = vmatmul.mubr.bf16.gmra.mxu0 %v1125
        %v1213 = vpop.f32.mrf.mxu0
        %v1214 = vadd.f32 0.0, %v1213
        %v1215 = vpop.f32.mrf.mxu0
        %v1216 = vpop.f32.mrf.mxu0
        %v1217 = vadd.f32 0.0, %v1216
        %v1218 = vpop.f32.mrf.mxu0
        %1219 = vdwg.mxu0
        %1222 = vrot.lane.b32.xlu0 %v1214, 48
        %v1223 = vpop.permute.xlu0 %1222
        %1224 = vrot.lane.b32.xlu0 %v1217, 48
        %v1225 = vpop.permute.xlu0 %1224
        %1228 = vst.msk [vmem:[#allocation2 + $0x30] sm:$0xff] %vm546, %v1223
        %1229 = vst.msk [vmem:[#allocation2 + $0x38] sm:$0xff] %vm546, %v1225
        %v1230 = vld [vmem:[#allocation2] sm:$0xff]
        %v1231 = vld [vmem:[#allocation2 + $0x8] sm:$0xff]
        %v1232 = vld [vmem:[#allocation2 + $0x10] sm:$0xff]
        %v1233 = vld [vmem:[#allocation2 + $0x18] sm:$0xff]
        %v1234 = vld [vmem:[#allocation2 + $0x20] sm:$0xff]
        %v1235 = vld [vmem:[#allocation2 + $0x28] sm:$0xff]
        %v1236 = vld [vmem:[#allocation2 + $0x30] sm:$0xff]
        %v1237 = vld [vmem:[#allocation2 + $0x38] sm:$0xff]
        %v1238 = vpack.c.bf16 %v1231, %v1230
        %v1239 = vpack.c.bf16 %v1233, %v1232
        %v1240 = vpack.c.bf16 %v1235, %v1234
        %v1241 = vpack.c.bf16 %v1237, %v1236
        %v1242 = vld [vmem:[#allocation8] sm:$0xf]
        %v1243 = vld [vmem:[#allocation8 + $0x4] sm:$0xf]
        %v1244 = vld [vmem:[#allocation8 + $0x8] sm:$0xf]
        %v1245 = vld [vmem:[#allocation8 + $0xc] sm:$0xf]
        %v1246 = vld [vmem:[#allocation8 + $0x10] sm:$0xf]
        %v1247 = vld [vmem:[#allocation8 + $0x14] sm:$0xf]
        %v1248 = vld [vmem:[#allocation8 + $0x18] sm:$0xf]
        %v1249 = vld [vmem:[#allocation8 + $0x1c] sm:$0xf]
        %v1250 = vld [vmem:[%s3] sm:$0x1]
        %v1252 = vlaneseq
        %v1253 = vshrl.u32 %v1252, 7
        %v1254 = vsub.s32 0, %v1253
        %v1255 = vrot.slane %v1250, %v1254
        %v1265 = vunpack.c.l.b16 %v1242
        %v1266 = vunpack.c.l.b16 %v1243
        %v1267 = vunpack.c.l.b16 %v1244
        %v1268 = vunpack.c.l.b16 %v1245
        %v1269 = vunpack.c.l.b16 %v1246
        %v1270 = vunpack.c.l.b16 %v1247
        %v1271 = vunpack.c.l.b16 %v1248
        %v1272 = vunpack.c.l.b16 %v1249
        %v1273 = vpack.c.b16 %v1266, %v1265
        %v1274 = vpack.c.b16 %v1268, %v1267
        %v1275 = vpack.c.b16 %v1270, %v1269
        %v1276 = vpack.c.b16 %v1272, %v1271
        %vm1281 = vcmask 523264
        %v1283 = vsel %vm1281, %v1238, 0
        %v1286 = vsel %vm1281, %v1239, 0
        %v1289 = vsel %vm1281, %v1240, 0
        %v1292 = vsel %vm1281, %v1241, 0
        %1294 = vmatprep.subr.bf16.mxu0 0
        %1295 = vmatpush1.bf16.msra.mxu0 0
        %1296 = vmatprep.subr.bf16.mxu0 0
        %1297 = vmatpush1.bf16.msra.mxu0 0
        %1298 = vmatprep.subr.bf16.mxu0 0
        %1299 = vmatpush1.bf16.msra.mxu0 0
        %1300 = vmatprep.subr.bf16.mxu0 0
        %1301 = vmatpush1.bf16.msra.mxu0 0
        %1302 = vmatprep.subr.bf16.mxu0 0
        %1303 = vmatpush1.bf16.msra.mxu0 %v1276
        %1304 = vmatprep.subr.bf16.mxu0 0
        %1305 = vmatpush1.bf16.msra.mxu0 %v1275
        %1306 = vmatprep.subr.bf16.mxu0 0
        %1307 = vmatpush1.bf16.msra.mxu0 %v1274
        %1308 = vmatprep.subr.bf16.mxu0 0
        %1309 = vmatpush1.bf16.msra.mxu0 %v1273
        %1310 = vmatprep.subr.bf16.mxu0 0
        %1311 = vmatpush2.bf16.msra.mxu0 0
        %1312 = vmatprep.subr.bf16.mxu0 0
        %1313 = vmatpush2.bf16.msra.mxu0 0
        %1314 = vmatprep.subr.bf16.mxu0 0
        %1315 = vmatpush2.bf16.msra.mxu0 0
        %1316 = vmatprep.subr.bf16.mxu0 0
        %1317 = vmatpush2.bf16.msra.mxu0 0
        %1318 = vmatprep.subr.bf16.mxu0 0
        %1319 = vmatpush2.bf16.msra.mxu0 0
        %1320 = vmatprep.subr.bf16.mxu0 0
        %1321 = vmatpush2.bf16.msra.mxu0 0
        %1322 = vmatprep.subr.bf16.mxu0 0
        %1323 = vmatpush2.bf16.msra.mxu0 0
        %1324 = vmatprep.subr.bf16.mxu0 0
        %1325 = vmatpush2.bf16.msra.mxu0 0
        %1326 = vmatprep.mubr.bf16.mxu0 0
        %1327 = vmatmul.mubr.bf16.gmra.mxu0 %v1283
        %v1328 = vpop.f32.mrf.mxu0
        %v1329 = vadd.f32 %v1255, %v1328
        %v1330 = vpop.f32.mrf.mxu0
        %v1331 = vpop.f32.mrf.mxu0
        %v1332 = vadd.f32 %v1255, %v1331
        %v1333 = vpop.f32.mrf.mxu0
        %1334 = vmatprep.mubr.bf16.mxu0 0
        %1335 = vmatmul.mubr.bf16.gmra.mxu0 %v1286
        %v1336 = vpop.f32.mrf.mxu0
        %v1337 = vadd.f32 %v1255, %v1336
        %v1338 = vpop.f32.mrf.mxu0
        %v1339 = vpop.f32.mrf.mxu0
        %v1340 = vadd.f32 %v1255, %v1339
        %v1341 = vpop.f32.mrf.mxu0
        %1342 = vmatprep.mubr.bf16.mxu0 0
        %1343 = vmatmul.mubr.bf16.gmra.mxu0 %v1289
        %v1344 = vpop.f32.mrf.mxu0
        %v1345 = vadd.f32 %v1255, %v1344
        %v1346 = vpop.f32.mrf.mxu0
        %v1347 = vpop.f32.mrf.mxu0
        %v1348 = vadd.f32 %v1255, %v1347
        %v1349 = vpop.f32.mrf.mxu0
        %1350 = vmatprep.mubr.bf16.mxu0 0
        %1351 = vmatmul.mubr.bf16.gmra.mxu0 %v1292
        %v1352 = vpop.f32.mrf.mxu0
        %v1353 = vadd.f32 %v1255, %v1352
        %v1354 = vpop.f32.mrf.mxu0
        %v1355 = vpop.f32.mrf.mxu0
        %v1356 = vadd.f32 %v1255, %v1355
        %v1357 = vpop.f32.mrf.mxu0
        %1358 = vdwg.mxu0
        %v1359 = vmax.f32 %v1329, 0.0
        %v1360 = vmax.f32 %v1332, 0.0
        %v1361 = vmax.f32 %v1337, 0.0
        %v1362 = vmax.f32 %v1340, 0.0
        %v1363 = vmax.f32 %v1345, 0.0
        %v1364 = vmax.f32 %v1348, 0.0
        %v1365 = vmax.f32 %v1353, 0.0
        %v1366 = vmax.f32 %v1356, 0.0
        %v1367 = vpack.c.bf16 %v1360, %v1359
        %v1368 = vpack.c.bf16 %v1362, %v1361
        %v1369 = vpack.c.bf16 %v1364, %v1363
        %v1370 = vpack.c.bf16 %v1366, %v1365
        %v1371 = vld [vmem:[#allocation9] sm:$0xf]
        %v1372 = vld [vmem:[#allocation9 + $0x4] sm:$0xf]
        %v1373 = vld [vmem:[#allocation9 + $0x8] sm:$0xf]
        %v1374 = vld [vmem:[#allocation9 + $0xc] sm:$0xf]
        %v1375 = vld [vmem:[#allocation9 + $0x10] sm:$0xf]
        %v1376 = vld [vmem:[#allocation9 + $0x14] sm:$0xf]
        %v1377 = vld [vmem:[#allocation9 + $0x18] sm:$0xf]
        %v1378 = vld [vmem:[#allocation9 + $0x1c] sm:$0xf]
        %v1379 = vld [vmem:[#allocation9 + $0x20] sm:$0xf]
        %v1380 = vld [vmem:[#allocation9 + $0x24] sm:$0xf]
        %v1381 = vld [vmem:[#allocation9 + $0x28] sm:$0xf]
        %v1382 = vld [vmem:[#allocation9 + $0x2c] sm:$0xf]
        %v1383 = vld [vmem:[#allocation9 + $0x30] sm:$0xf]
        %v1384 = vld [vmem:[#allocation9 + $0x34] sm:$0xf]
        %v1385 = vld [vmem:[#allocation9 + $0x38] sm:$0xf]
        %v1386 = vld [vmem:[#allocation9 + $0x3c] sm:$0xf]
        %v1387 = vld [vmem:[%s5] sm:$0x1]
        %v1389 = vlaneseq
        %v1390 = vshrl.u32 %v1389, 7
        %v1391 = vsub.s32 0, %v1390
        %v1392 = vrot.slane %v1387, %v1391
        %v1410 = vunpack.c.l.b16 %v1371
        %v1411 = vunpack.c.l.b16 %v1372
        %v1412 = vunpack.c.l.b16 %v1373
        %v1413 = vunpack.c.l.b16 %v1374
        %v1414 = vunpack.c.l.b16 %v1375
        %v1415 = vunpack.c.l.b16 %v1376
        %v1416 = vunpack.c.l.b16 %v1377
        %v1417 = vunpack.c.l.b16 %v1378
        %v1418 = vunpack.c.l.b16 %v1379
        %v1419 = vunpack.c.l.b16 %v1380
        %v1420 = vunpack.c.l.b16 %v1381
        %v1421 = vunpack.c.l.b16 %v1382
        %v1422 = vunpack.c.l.b16 %v1383
        %v1423 = vunpack.c.l.b16 %v1384
        %v1424 = vunpack.c.l.b16 %v1385
        %v1425 = vunpack.c.l.b16 %v1386
        %v1426 = vpack.c.b16 %v1411, %v1410
        %v1427 = vpack.c.b16 %v1413, %v1412
        %v1428 = vpack.c.b16 %v1415, %v1414
        %v1429 = vpack.c.b16 %v1417, %v1416
        %v1430 = vpack.c.b16 %v1419, %v1418
        %v1431 = vpack.c.b16 %v1421, %v1420
        %v1432 = vpack.c.b16 %v1423, %v1422
        %v1433 = vpack.c.b16 %v1425, %v1424
        %1442 = vmatprep.subr.bf16.mxu0 0
        %1443 = vmatpush1.bf16.msra.mxu0 %v1433
        %1444 = vmatprep.subr.bf16.mxu0 0
        %1445 = vmatpush1.bf16.msra.mxu0 %v1432
        %1446 = vmatprep.subr.bf16.mxu0 0
        %1447 = vmatpush1.bf16.msra.mxu0 %v1431
        %1448 = vmatprep.subr.bf16.mxu0 0
        %1449 = vmatpush1.bf16.msra.mxu0 %v1430
        %1450 = vmatprep.subr.bf16.mxu0 0
        %1451 = vmatpush1.bf16.msra.mxu0 %v1429
        %1452 = vmatprep.subr.bf16.mxu0 0
        %1453 = vmatpush1.bf16.msra.mxu0 %v1428
        %1454 = vmatprep.subr.bf16.mxu0 0
        %1455 = vmatpush1.bf16.msra.mxu0 %v1427
        %1456 = vmatprep.subr.bf16.mxu0 0
        %1457 = vmatpush1.bf16.msra.mxu0 %v1426
        %1458 = vmatprep.subr.bf16.mxu0 0
        %1459 = vmatpush2.bf16.msra.mxu0 0
        %1460 = vmatprep.subr.bf16.mxu0 0
        %1461 = vmatpush2.bf16.msra.mxu0 0
        %1462 = vmatprep.subr.bf16.mxu0 0
        %1463 = vmatpush2.bf16.msra.mxu0 0
        %1464 = vmatprep.subr.bf16.mxu0 0
        %1465 = vmatpush2.bf16.msra.mxu0 0
        %1466 = vmatprep.subr.bf16.mxu0 0
        %1467 = vmatpush2.bf16.msra.mxu0 0
        %1468 = vmatprep.subr.bf16.mxu0 0
        %1469 = vmatpush2.bf16.msra.mxu0 0
        %1470 = vmatprep.subr.bf16.mxu0 0
        %1471 = vmatpush2.bf16.msra.mxu0 0
        %1472 = vmatprep.subr.bf16.mxu0 0
        %1473 = vmatpush2.bf16.msra.mxu0 0
        %1474 = vmatprep.mubr.bf16.mxu0 0
        %1475 = vmatmul.mubr.bf16.gmra.mxu0 %v1367
        %v1476 = vpop.f32.mrf.mxu0
        %v1477 = vadd.f32 %v1392, %v1476
        %v1478 = vpop.f32.mrf.mxu0
        %v1479 = vpop.f32.mrf.mxu0
        %v1480 = vadd.f32 %v1392, %v1479
        %v1481 = vpop.f32.mrf.mxu0
        %1482 = vmatprep.mubr.bf16.mxu0 0
        %1483 = vmatmul.mubr.bf16.gmra.mxu0 %v1368
        %v1484 = vpop.f32.mrf.mxu0
        %v1485 = vadd.f32 %v1392, %v1484
        %v1486 = vpop.f32.mrf.mxu0
        %v1487 = vpop.f32.mrf.mxu0
        %v1488 = vadd.f32 %v1392, %v1487
        %v1489 = vpop.f32.mrf.mxu0
        %1490 = vmatprep.mubr.bf16.mxu0 0
        %1491 = vmatmul.mubr.bf16.gmra.mxu0 %v1369
        %v1492 = vpop.f32.mrf.mxu0
        %v1493 = vadd.f32 %v1392, %v1492
        %v1494 = vpop.f32.mrf.mxu0
        %v1495 = vpop.f32.mrf.mxu0
        %v1496 = vadd.f32 %v1392, %v1495
        %v1497 = vpop.f32.mrf.mxu0
        %1498 = vmatprep.mubr.bf16.mxu0 0
        %1499 = vmatmul.mubr.bf16.gmra.mxu0 %v1370
        %v1500 = vpop.f32.mrf.mxu0
        %v1501 = vadd.f32 %v1392, %v1500
        %v1502 = vpop.f32.mrf.mxu0
        %v1503 = vpop.f32.mrf.mxu0
        %v1504 = vadd.f32 %v1392, %v1503
        %v1505 = vpop.f32.mrf.mxu0
        %1506 = vdwg.mxu0
        %1507 = vst [vmem:[%s314] sm:$0xff] %v1477
        %1508 = vst [vmem:[%s314 + $0x8] sm:$0xff] %v1480
        %1509 = vst [vmem:[%s314 + $0x10] sm:$0xff] %v1485
        %1510 = vst [vmem:[%s314 + $0x18] sm:$0xff] %v1488
        %1511 = vst [vmem:[%s314 + $0x20] sm:$0xff] %v1493
        %1512 = vst [vmem:[%s314 + $0x28] sm:$0xff] %v1496
        %1513 = vst [vmem:[%s314 + $0x30] sm:$0xff] %v1501
        %1514 = vst [vmem:[%s314 + $0x38] sm:$0xff] %v1504
        %s1515 = sand.u32 %s164, 1
        %s1516 = scalar_lea.sflag [#allocation5], %s1515
        %s1517 = sand.u32 %s164, 1
        %s1518 = smul.addr %s1517, 64
        %s1519 = scalar_lea.vmem [#allocation11], %s1518
        // Predicated region
        $region61: #{tpu_custom_call.1} parent=43 // pred_check
          %p1520 = pneg %p174
        $region62: #{tpu_custom_call.1} parent=43 // pred_check_branch
          %1522 = sbr.rel (%p1520) target = $region64
        $region63: #{tpu_custom_call.1} parent=43 // pred_region
          %s1523 = smul.u32 4, %s25
          %s1525 = ssub.s32 1024, 1024
          %1526 = vsyncadd %s1516, %s1525
          %s1527 = smul.addr %s1523, 2
          %s1528 = smul.addr %s1527, 128
          %s1529 = scalar_lea.hbm %s6, %s1528
          %s1530 = sshll.u32 %s1519, 4
          %s1531 = int_to_ptr.vmem [resolvable:$true] %s1530
          %1536 = dma.vmem_to_hbm [thread:$0]  %s1531, 1024, %s1529, %s1516, 128, 128, 8
        $region64: #{tpu_custom_call.1} parent=43 // pred_fallthru
          _
      $region44: #{tpu_custom_call.1} parent=5 // pred_fallthru
        _
      %p1537 = scmp.le.s32.totalorder 2, %s20
      // Predicated region
      $region65: #{tpu_custom_call.1} parent=5 // pred_check
        %p1538 = pneg %p1537
      $region66: #{tpu_custom_call.1} parent=5 // pred_check_branch
        %1540 = sbr.rel (%p1538) target = $region68
      $region67: #{tpu_custom_call.1} parent=5 // pred_region
        %s1541 = ssub.s32 %s20, 2
        // Predicated region
        $region69: #{tpu_custom_call.1} parent=67 // pred_check
          %p1542 = pneg %p180
        $region70: #{tpu_custom_call.1} parent=67 // pred_check_branch
          %1544 = sbr.rel (%p1542) target = $region72
        $region71: #{tpu_custom_call.1} parent=67 // pred_region
          %s1545 = sand.u32 %s165, 1
          %s1546 = scalar_lea.sflag [#allocation5], %s1545
          %s1547 = sand.u32 %s165, 1
          %s1548 = smul.addr %s1547, 64
          %s1549 = scalar_lea.vmem [#allocation11], %s1548
          %1550 = dma.done %s1546, 1024
        $region72: #{tpu_custom_call.1} parent=67 // pred_fallthru
          _
      $region68: #{tpu_custom_call.1} parent=5 // pred_fallthru
        _
    $region6: #{tpu_custom_call.1} parent=1 // loop_footer
      %s24 = sadd.s32 1, %s20
    $region7: #{tpu_custom_call.1} parent=1 // loop_footer_branch
      %19 = sbr.rel target = $region3
    $region8: #{tpu_custom_call.1} parent=1 // loop_exit
      _
    %1551 = vsyncpa [#allocation4], 1
    %s1552 = scalar_lea.sflag [#allocation4], 1
    %1553 = vsyncpa %s1552, 1
    %1554 = vsyncpa [#allocation7], 1
    %1555 = vsyncpa [#allocation10], 1
    %1556 = vsyncpa [#allocation5], 1
    %s1557 = scalar_lea.sflag [#allocation5], 1
    %1558 = vsyncpa %s1557, 1

</llo_original>
